<compile_context>
chip_gen: v7x
topology: tpu7x:2x2x1
jax: 0.10.0
libtpu: 0.0.40
codegen_flags: <defaults>
</compile_context>

<pallas_src>
import numpy as np
import jax
import jax.numpy as jnp
from jax.experimental import pallas as pl
from jax.experimental.pallas import tpu as pltpu


# ---------------------------------------------------------------------------
# Data-independent operator construction (setup / glue, plain numpy, float64)
# ---------------------------------------------------------------------------
def adaptive_avg_pool_matrix(in_size: int, out_size: int) -> np.ndarray:
    """P[i, h]: pooled[i] = sum_h P[i, h] * x[h]  (torch AdaptiveAvgPool bins)."""
    P = np.zeros((out_size, in_size), dtype=np.float64)
    for i in range(out_size):
        start = (i * in_size) // out_size
        end = -((-(i + 1) * in_size) // out_size)  # ceil((i+1)*in/out)
        P[i, start:end] = 1.0 / float(end - start)
    return P


def bilinear_upsample_matrix(out_size: int, in_size: int) -> np.ndarray:
    """A[h, i]: out[h] = sum_i A[h, i] * in[i]; bilinear, align_corners=True."""
    A = np.zeros((out_size, in_size), dtype=np.float64)
    if in_size == 1:
        A[:, 0] = 1.0
        return A
    scale = (in_size - 1) / (out_size - 1)
    for h in range(out_size):
        src = h * scale
        i0 = min(int(np.floor(src)), in_size - 2)
        frac = src - i0
        A[h, i0] += 1.0 - frac
        A[h, i0 + 1] += frac
    return A


def build_factored_operators(H: int, W: int, pool_sizes):
    """Factored pyramid operators.

    Returns (Dcat, Ucat, mask):
      Dcat (S, Ppad): column block s = kron(Ph_s, Pw_s)^T  (pooling, all stages)
      Ucat (Ppad, S): row    block s = kron(Ah_s, Aw_s)^T  (bilinear upsample)
      mask (n, Ppad): 1.0 on stage-s pooled columns, 0 elsewhere (incl. padding)
    so that  xatt = sum_s Wfused[s] @ ((X @ Dcat) * mask[s]) @ Ucat.
    """
    S = H * W
    P = sum(s * s for s in pool_sizes)
    Ppad = max(64, ((P + 63) // 64) * 64)
    n = len(pool_sizes)
    Dcat = np.zeros((S, Ppad), dtype=np.float64)
    Ucat = np.zeros((Ppad, S), dtype=np.float64)
    mask = np.zeros((n, Ppad), dtype=np.float64)
    off = 0
    for idx, s in enumerate(pool_sizes):
        Ph = adaptive_avg_pool_matrix(H, s)
        Pw = adaptive_avg_pool_matrix(W, s)
        Ah = bilinear_upsample_matrix(H, s)
        Aw = bilinear_upsample_matrix(W, s)
        K = np.kron(Ph, Pw)          # (s*s, S)  pooling
        U = np.kron(Ah, Aw)          # (S, s*s)  upsample
        sz = s * s
        Dcat[:, off:off + sz] = K.T
        Ucat[off:off + sz, :] = U.T
        mask[idx, off:off + sz] = 1.0
        off += sz
    return Dcat, Ucat, mask


def build_fused_channel_mix(wconv_all, watt) -> np.ndarray:
    """Wfused[s] = watt[:, s*C:(s+1)*C] @ wconv_all[s]  -> (n_stages, C, C), float64."""
    wconv64 = np.asarray(wconv_all, np.float64)                 # (n, C, C)
    watt64 = np.asarray(watt, np.float64)                       # (C, n*C)
    n_stages, C, _ = wconv64.shape
    watt_r = watt64.reshape(C, n_stages, C).transpose(1, 0, 2)  # (n, C, C)
    return np.einsum('sdc,sce->sde', watt_r, wconv64)           # (n, C, C)


# ---------------------------------------------------------------------------
# Pallas kernel: BB batch images per grid step, channels stacked along M
# ---------------------------------------------------------------------------
def _se_attention_kernel(x_ref, dcat_ref, ucat_ref, mask_ref, wf_ref,
                         w1t_ref, w2_ref, o_ref):
    # x_ref:    (BB*C, S)         BB batch images, channels stacked on sublanes
    # dcat_ref: (S, Ppad)         pooling operators of all pyramid stages
    # ucat_ref: (Ppad, S)         bilinear-upsample operators of all stages
    # mask_ref: (n_stages, Ppad)  stage column masks (block-diagonal selector)
    # wf_ref:   (n_stages, C, C)  fused attention_conv . stage_conv channel mixes
    # w1t_ref:  (C, Cr)           SE fc1 weight (transposed)
    # w2_ref:   (C, Cr)           SE fc2 weight
    # o_ref:    (BB*C, S)
    n_stages, C, _ = wf_ref.shape
    M, S = x_ref.shape
    BB = M // C

    # 1) Adaptive-avg pooling of ALL pyramid stages for ALL stacked images:
    #    one MXU matmul (M = BB*C, K = S, N = Ppad).
    pooled = jnp.dot(x_ref[...], dcat_ref[...],
                     preferred_element_type=jnp.float32)        # (BB*C, Ppad)
    mask = mask_ref[...]                                        # (n, Ppad)

    inv_s = 1.0 / S
    for bb in range(BB):                       # static unroll (BB in {1, 2, 4})
        r0 = bb * C
        pooled_b = pooled[r0:r0 + C, :]                         # (C, Ppad)

        # 2) Fused channel mix per stage (block-diagonal via column masks).
        mixed = jnp.dot(wf_ref[0], pooled_b * mask[0:1, :],
                        preferred_element_type=jnp.float32)     # (C, Ppad)
        for s in range(1, n_stages):           # static unroll
            mixed = mixed + jnp.dot(wf_ref[s], pooled_b * mask[s:s + 1, :],
                                    preferred_element_type=jnp.float32)

        # 3) Bilinear upsample of all stages + stage sum in one MXU matmul.
        xatt = jnp.dot(mixed, ucat_ref[...],
                       preferred_element_type=jnp.float32)      # (C, S)

        # 4) Squeeze-excitation gate: GAP -> FC -> ReLU -> FC -> sigmoid.
        #    Kept off the MXU (VPU elementwise + XLU reductions, EUP sigmoid).
        y = jnp.sum(xatt, axis=1, keepdims=True) * inv_s                          # (C, 1)
        h = jnp.maximum(jnp.sum(w1t_ref[...] * y, axis=0, keepdims=True), 0.0)    # (1, Cr)
        g = jax.nn.sigmoid(jnp.sum(w2_ref[...] * h, axis=1, keepdims=True))       # (C, 1)

        o_ref[r0:r0 + C, :] = (xatt * g).astype(o_ref.dtype)


def _pick_batch_block(B: int) -> int:
    # Raise the pooling matmul's M dimension (BB*C rows) while keeping at least
    # 2 grid steps so both v7x TensorCores get work.
    for bb in (4, 2):
        if B % bb == 0 and (B // bb) >= 2:
            return bb
    return 1


def se_attention_pallas(x, dcat, ucat, mask, wf, w1, w2, *, batch_block=None):
    """x: (B, C, H, W) float32 NCHW. Returns (B, C, H, W)."""
    B, C, H, W = x.shape
    S = H * W
    n_stages = wf.shape[0]
    Ppad = dcat.shape[1]
    cr = w1.shape[0]
    assert dcat.shape == (S, Ppad)
    assert ucat.shape == (Ppad, S)
    assert mask.shape == (n_stages, Ppad)

    bb = _pick_batch_block(B) if batch_block is None else batch_block
    assert B % bb == 0

    x2d = x.reshape(B * C, S)                 # free, row-major contiguous
    w1t = w1.T                                # (C, Cr)

    out2d = pl.pallas_call(
        _se_attention_kernel,
        out_shape=jax.ShapeDtypeStruct((B * C, S), x.dtype),
        grid_spec=pltpu.PrefetchScalarGridSpec(
            num_scalar_prefetch=0,
            grid=(B // bb,),
            in_specs=[
                pl.BlockSpec((bb * C, S), lambda i: (i, 0)),
                pl.BlockSpec((S, Ppad), lambda i: (0, 0)),
                pl.BlockSpec((Ppad, S), lambda i: (0, 0)),
                pl.BlockSpec((n_stages, Ppad), lambda i: (0, 0)),
                pl.BlockSpec((n_stages, C, C), lambda i: (0, 0, 0)),
                pl.BlockSpec((C, cr), lambda i: (0, 0)),
                pl.BlockSpec((C, cr), lambda i: (0, 0)),
            ],
            out_specs=pl.BlockSpec((bb * C, S), lambda i: (i, 0)),
        ),
        compiler_params=pltpu.CompilerParams(
            dimension_semantics=("parallel",),
        ),
    )(x2d, dcat, ucat, mask, wf, w1t, w2)
    return out2d.reshape(B, C, H, W)


# ---------------------------------------------------------------------------
# Float64 numpy reference (original op order: pool -> conv -> upsample -> ...)
# ---------------------------------------------------------------------------
def se_attention_reference_np(x, pool_sizes, wconv_all, watt, w1, w2):
    x = np.asarray(x, np.float64)
    wconv_all = np.asarray(wconv_all, np.float64)
    watt = np.asarray(watt, np.float64)
    w1 = np.asarray(w1, np.float64)
    w2 = np.asarray(w2, np.float64)
    B, C, H, W = x.shape
    pyramids = []
    for idx, s in enumerate(pool_sizes):
        Ph = adaptive_avg_pool_matrix(H, s)
        Pw = adaptive_avg_pool_matrix(W, s)
        Ah = bilinear_upsample_matrix(H, s)
        Aw = bilinear_upsample_matrix(W, s)
        pooled = np.einsum('ih,bchw,jw->bcij', Ph, x, Pw)
        conv = np.einsum('dc,bcij->bdij', wconv_all[idx], pooled)
        up = np.einsum('hi,bcij,wj->bchw', Ah, conv, Aw)
        pyramids.append(up)
    cat = np.concatenate(pyramids, axis=1)                       # (B, 4C, H, W)
    xatt = np.einsum('dc,bchw->bdhw', watt, cat)                 # (B, C, H, W)
    y = xatt.mean(axis=(2, 3))                                   # (B, C)
    hid = np.maximum(y @ w1.T, 0.0)                              # (B, Cr)
    gate = 1.0 / (1.0 + np.exp(-(hid @ w2.T)))                   # (B, C)
    return xatt * gate[:, :, None, None]


if __name__ == "__main__":
    # Shapes consistent with SEAttention(channel=64, reduction=16, pool_sizes=[1,2,3,6])
    B, C, H, W = 2, 64, 16, 16
    reduction = 16
    pool_sizes = [1, 2, 3, 6]
    cr = C // reduction

    key = jax.random.PRNGKey(0)
    k_x, k_conv, k_att, k_w1, k_w2 = jax.random.split(key, 5)

    x = jax.random.normal(k_x, (B, C, H, W), dtype=jnp.float32)

    # Synthetic weights matching the module's parameter shapes:
    # per-stage Conv2d(C, C, 1, bias=False); Conv2d(4C, C, 1, bias=False);
    # Linear(C, C//r, bias=False); Linear(C//r, C, bias=False).
    wconv_all = jax.random.normal(k_conv, (len(pool_sizes), C, C), jnp.float32) * (2.0 / C) ** 0.5
    watt = jax.random.normal(k_att, (C, len(pool_sizes) * C), jnp.float32) * (2.0 / (len(pool_sizes) * C)) ** 0.5
    w1 = jax.random.normal(k_w1, (cr, C), jnp.float32) * 0.05
    w2 = jax.random.normal(k_w2, (C, cr), jnp.float32) * 0.05

    # Host-side float64 setup: fused channel-mix weights and factored
    # (pool / upsample / stage-mask) spatial operators.
    wf = jnp.asarray(build_fused_channel_mix(np.asarray(wconv_all), np.asarray(watt)),
                     jnp.float32)
    dcat_np, ucat_np, mask_np = build_factored_operators(H, W, pool_sizes)
    dcat = jnp.asarray(dcat_np, jnp.float32)
    ucat = jnp.asarray(ucat_np, jnp.float32)
    mask = jnp.asarray(mask_np, jnp.float32)

    out = jax.block_until_ready(se_attention_pallas(x, dcat, ucat, mask, wf, w1, w2))
    ref = se_attention_reference_np(np.asarray(x), pool_sizes, np.asarray(wconv_all),
                                    np.asarray(watt), np.asarray(w1), np.asarray(w2))

    assert out.shape == (B, C, H, W)
    np.testing.assert_allclose(np.asarray(out), ref.astype(np.float32), rtol=2e-2, atol=2e-2)
    print("KERNEL_OK")
</pallas_src>

<mosaic_0001>
module attributes {stable_mosaic.version = 11 : i64} {
  func.func @_se_attention_kernel(%arg0: i32, %arg1: memref<64x256xf32, #tpu.memory_space<vmem>>, %arg2: memref<256x64xf32, #tpu.memory_space<vmem>>, %arg3: memref<64x256xf32, #tpu.memory_space<vmem>>, %arg4: memref<4x64xf32, #tpu.memory_space<vmem>>, %arg5: memref<4x64x64xf32, #tpu.memory_space<vmem>>, %arg6: memref<64x4xf32, #tpu.memory_space<vmem>>, %arg7: memref<64x4xf32, #tpu.memory_space<vmem>>, %arg8: memref<64x256xf32, #tpu.memory_space<vmem>>) attributes {dimension_semantics = [#tpu.dimension_semantics<parallel>], iteration_bounds = array<i64: 2>, scalar_prefetch = 0 : i64, scratch_operands = 0 : i64, tpu.core_type = #tpu.core_type<tc>, window_params = [{transform_indices = @transform_0, window_bounds = array<i64: 64, 256>}, {pipeline_mode = #tpu.pipeline_mode<synchronous>, transform_indices = @transform_1, window_bounds = array<i64: 256, 64>}, {pipeline_mode = #tpu.pipeline_mode<synchronous>, transform_indices = @transform_2, window_bounds = array<i64: 64, 256>}, {pipeline_mode = #tpu.pipeline_mode<synchronous>, transform_indices = @transform_3, window_bounds = array<i64: 4, 64>}, {pipeline_mode = #tpu.pipeline_mode<synchronous>, transform_indices = @transform_4, window_bounds = array<i64: 4, 64, 64>}, {pipeline_mode = #tpu.pipeline_mode<synchronous>, transform_indices = @transform_5, window_bounds = array<i64: 64, 4>}, {pipeline_mode = #tpu.pipeline_mode<synchronous>, transform_indices = @transform_6, window_bounds = array<i64: 64, 4>}, {transform_indices = @transform_7, window_bounds = array<i64: 64, 256>}]} {
    %c0 = arith.constant 0 : index
    %c0_0 = arith.constant 0 : index
    %0 = vector.load %arg1[%c0, %c0_0] : memref<64x256xf32, #tpu.memory_space<vmem>>, vector<64x256xf32>
    %c0_1 = arith.constant 0 : index
    %c0_2 = arith.constant 0 : index
    %1 = vector.load %arg2[%c0_1, %c0_2] : memref<256x64xf32, #tpu.memory_space<vmem>>, vector<256x64xf32>
    %cst = arith.constant dense<0.000000e+00> : vector<64x64xf32>
    %2 = tpu.matmul %0, %1, %cst {dimension_numbers = #tpu.dot_dimension_numbers<[1], [0], [0], [1], [0, 0, 1, 1], [], []>} : vector<64x256xf32>, vector<256x64xf32>, vector<64x64xf32> -> vector<64x64xf32>
    %c0_3 = arith.constant 0 : index
    %c0_4 = arith.constant 0 : index
    %3 = vector.load %arg4[%c0_3, %c0_4] : memref<4x64xf32, #tpu.memory_space<vmem>>, vector<4x64xf32>
    %c0_5 = arith.constant 0 : index
    %c0_6 = arith.constant 0 : index
    %c0_7 = arith.constant 0 : index
    %4 = vector.load %arg5[%c0_5, %c0_6, %c0_7] : memref<4x64x64xf32, #tpu.memory_space<vmem>>, vector<1x64x64xf32>
    %5 = vector.shape_cast %4 : vector<1x64x64xf32> to vector<64x64xf32>
    %6 = vector.extract_strided_slice %3 {offsets = [0, 0], sizes = [1, 64], strides = [1, 1]} : vector<4x64xf32> to vector<1x64xf32>
    %7 = vector.broadcast %6 : vector<1x64xf32> to vector<64x64xf32>
    %8 = arith.mulf %2, %7 : vector<64x64xf32>
    %cst_8 = arith.constant dense<0.000000e+00> : vector<64x64xf32>
    %9 = tpu.matmul %5, %8, %cst_8 {dimension_numbers = #tpu.dot_dimension_numbers<[1], [0], [0], [1], [0, 0, 1, 1], [], []>} : vector<64x64xf32>, vector<64x64xf32>, vector<64x64xf32> -> vector<64x64xf32>
    %c1 = arith.constant 1 : index
    %c0_9 = arith.constant 0 : index
    %c0_10 = arith.constant 0 : index
    %10 = vector.load %arg5[%c1, %c0_9, %c0_10] : memref<4x64x64xf32, #tpu.memory_space<vmem>>, vector<1x64x64xf32>
    %11 = vector.shape_cast %10 : vector<1x64x64xf32> to vector<64x64xf32>
    %12 = vector.extract_strided_slice %3 {offsets = [1, 0], sizes = [1, 64], strides = [1, 1]} : vector<4x64xf32> to vector<1x64xf32>
    %13 = vector.broadcast %12 : vector<1x64xf32> to vector<64x64xf32>
    %14 = arith.mulf %2, %13 : vector<64x64xf32>
    %cst_11 = arith.constant dense<0.000000e+00> : vector<64x64xf32>
    %15 = tpu.matmul %11, %14, %cst_11 {dimension_numbers = #tpu.dot_dimension_numbers<[1], [0], [0], [1], [0, 0, 1, 1], [], []>} : vector<64x64xf32>, vector<64x64xf32>, vector<64x64xf32> -> vector<64x64xf32>
    %16 = arith.addf %9, %15 : vector<64x64xf32>
    %c2 = arith.constant 2 : index
    %c0_12 = arith.constant 0 : index
    %c0_13 = arith.constant 0 : index
    %17 = vector.load %arg5[%c2, %c0_12, %c0_13] : memref<4x64x64xf32, #tpu.memory_space<vmem>>, vector<1x64x64xf32>
    %18 = vector.shape_cast %17 : vector<1x64x64xf32> to vector<64x64xf32>
    %19 = vector.extract_strided_slice %3 {offsets = [2, 0], sizes = [1, 64], strides = [1, 1]} : vector<4x64xf32> to vector<1x64xf32>
    %20 = vector.broadcast %19 : vector<1x64xf32> to vector<64x64xf32>
    %21 = arith.mulf %2, %20 : vector<64x64xf32>
    %cst_14 = arith.constant dense<0.000000e+00> : vector<64x64xf32>
    %22 = tpu.matmul %18, %21, %cst_14 {dimension_numbers = #tpu.dot_dimension_numbers<[1], [0], [0], [1], [0, 0, 1, 1], [], []>} : vector<64x64xf32>, vector<64x64xf32>, vector<64x64xf32> -> vector<64x64xf32>
    %23 = arith.addf %16, %22 : vector<64x64xf32>
    %c3 = arith.constant 3 : index
    %c0_15 = arith.constant 0 : index
    %c0_16 = arith.constant 0 : index
    %24 = vector.load %arg5[%c3, %c0_15, %c0_16] : memref<4x64x64xf32, #tpu.memory_space<vmem>>, vector<1x64x64xf32>
    %25 = vector.shape_cast %24 : vector<1x64x64xf32> to vector<64x64xf32>
    %26 = vector.extract_strided_slice %3 {offsets = [3, 0], sizes = [1, 64], strides = [1, 1]} : vector<4x64xf32> to vector<1x64xf32>
    %27 = vector.broadcast %26 : vector<1x64xf32> to vector<64x64xf32>
    %28 = arith.mulf %2, %27 : vector<64x64xf32>
    %cst_17 = arith.constant dense<0.000000e+00> : vector<64x64xf32>
    %29 = tpu.matmul %25, %28, %cst_17 {dimension_numbers = #tpu.dot_dimension_numbers<[1], [0], [0], [1], [0, 0, 1, 1], [], []>} : vector<64x64xf32>, vector<64x64xf32>, vector<64x64xf32> -> vector<64x64xf32>
    %30 = arith.addf %23, %29 : vector<64x64xf32>
    %c0_18 = arith.constant 0 : index
    %c0_19 = arith.constant 0 : index
    %31 = vector.load %arg3[%c0_18, %c0_19] : memref<64x256xf32, #tpu.memory_space<vmem>>, vector<64x256xf32>
    %cst_20 = arith.constant dense<0.000000e+00> : vector<64x256xf32>
    %32 = tpu.matmul %30, %31, %cst_20 {dimension_numbers = #tpu.dot_dimension_numbers<[1], [0], [0], [1], [0, 0, 1, 1], [], []>} : vector<64x64xf32>, vector<64x256xf32>, vector<64x256xf32> -> vector<64x256xf32>
    %cst_21 = arith.constant dense<0.000000e+00> : vector<64xf32>
    %33 = vector.multi_reduction <add>, %32, %cst_21 [1] : vector<64x256xf32> to vector<64xf32>
    %34 = vector.shape_cast %33 : vector<64xf32> to vector<64x1xf32>
    %cst_22 = arith.constant 3.906250e-03 : f32
    %35 = vector.broadcast %cst_22 : f32 to vector<64x1xf32>
    %36 = arith.mulf %34, %35 : vector<64x1xf32>
    %c0_23 = arith.constant 0 : index
    %c0_24 = arith.constant 0 : index
    %37 = vector.load %arg6[%c0_23, %c0_24] : memref<64x4xf32, #tpu.memory_space<vmem>>, vector<64x4xf32>
    %38 = vector.broadcast %36 : vector<64x1xf32> to vector<64x4xf32>
    %39 = arith.mulf %37, %38 : vector<64x4xf32>
    %cst_25 = arith.constant dense<0.000000e+00> : vector<4xf32>
    %40 = vector.multi_reduction <add>, %39, %cst_25 [0] : vector<64x4xf32> to vector<4xf32>
    %41 = vector.shape_cast %40 : vector<4xf32> to vector<1x4xf32>
    %cst_26 = arith.constant 0.000000e+00 : f32
    %42 = vector.broadcast %cst_26 : f32 to vector<1x4xf32>
    %43 = arith.maximumf %41, %42 : vector<1x4xf32>
    %c0_27 = arith.constant 0 : index
    %c0_28 = arith.constant 0 : index
    %44 = vector.load %arg7[%c0_27, %c0_28] : memref<64x4xf32, #tpu.memory_space<vmem>>, vector<64x4xf32>
    %45 = vector.broadcast %43 : vector<1x4xf32> to vector<64x4xf32>
    %46 = arith.mulf %44, %45 : vector<64x4xf32>
    %cst_29 = arith.constant dense<0.000000e+00> : vector<64xf32>
    %47 = vector.multi_reduction <add>, %46, %cst_29 [1] : vector<64x4xf32> to vector<64xf32>
    %48 = vector.shape_cast %47 : vector<64xf32> to vector<64x1xf32>
    %49 = arith.negf %48 : vector<64x1xf32>
    %50 = math.exp %49 : vector<64x1xf32>
    %cst_30 = arith.constant 1.000000e+00 : f32
    %51 = vector.broadcast %cst_30 : f32 to vector<64x1xf32>
    %52 = arith.addf %51, %50 : vector<64x1xf32>
    %53 = arith.divf %51, %52 : vector<64x1xf32>
    %54 = vector.broadcast %53 : vector<64x1xf32> to vector<64x256xf32>
    %55 = arith.mulf %32, %54 : vector<64x256xf32>
    %c0_31 = arith.constant 0 : index
    %c0_32 = arith.constant 0 : index
    %56 = vector.load %arg8[%c0_31, %c0_32] : memref<64x256xf32, #tpu.memory_space<vmem>>, vector<64x256xf32>
    tpu.vector_store %arg8[%c0_31, %c0_32], %55 {strides = array<i32>} : memref<64x256xf32, #tpu.memory_space<vmem>>, vector<64x256xf32>,
    return
  }
  func.func @transform_0(%arg0: i32) -> (i32, i32) {
    %c0_i32 = arith.constant 0 : i32
    %c0_i32_0 = arith.constant 0 : i32
    return %arg0, %c0_i32 : i32, i32
  }
  func.func @transform_1(%arg0: i32) -> (i32, i32) {
    %c0_i32 = arith.constant 0 : i32
    %c0_i32_0 = arith.constant 0 : i32
    %c0_i32_1 = arith.constant 0 : i32
    return %c0_i32, %c0_i32_0 : i32, i32
  }
  func.func @transform_2(%arg0: i32) -> (i32, i32) {
    %c0_i32 = arith.constant 0 : i32
    %c0_i32_0 = arith.constant 0 : i32
    %c0_i32_1 = arith.constant 0 : i32
    return %c0_i32, %c0_i32_0 : i32, i32
  }
  func.func @transform_3(%arg0: i32) -> (i32, i32) {
    %c0_i32 = arith.constant 0 : i32
    %c0_i32_0 = arith.constant 0 : i32
    %c0_i32_1 = arith.constant 0 : i32
    return %c0_i32, %c0_i32_0 : i32, i32
  }
  func.func @transform_4(%arg0: i32) -> (i32, i32, i32) {
    %c0_i32 = arith.constant 0 : i32
    %c0_i32_0 = arith.constant 0 : i32
    %c0_i32_1 = arith.constant 0 : i32
    %c0_i32_2 = arith.constant 0 : i32
    return %c0_i32, %c0_i32_0, %c0_i32_1 : i32, i32, i32
  }
  func.func @transform_5(%arg0: i32) -> (i32, i32) {
    %c0_i32 = arith.constant 0 : i32
    %c0_i32_0 = arith.constant 0 : i32
    %c0_i32_1 = arith.constant 0 : i32
    return %c0_i32, %c0_i32_0 : i32, i32
  }
  func.func @transform_6(%arg0: i32) -> (i32, i32) {
    %c0_i32 = arith.constant 0 : i32
    %c0_i32_0 = arith.constant 0 : i32
    %c0_i32_1 = arith.constant 0 : i32
    return %c0_i32, %c0_i32_0 : i32, i32
  }
  func.func @transform_7(%arg0: i32) -> (i32, i32) {
    %c0_i32 = arith.constant 0 : i32
    %c0_i32_0 = arith.constant 0 : i32
    return %arg0, %c0_i32 : i32, i32
  }
}

</mosaic_0001>

<llo_original>
// kernel: tpu_custom_call.1
$region0: #{tpu_custom_call.1}
  #allocation0 [shape = 'u32[]', space=smem, size = 0x4, offset = 0x4, fixed_abs, tag = 'smem constant byte address 0x4 - core index']
  #allocation1 [shape = 'u32[144,128]{1,0:T(1,128)}', space=vmem, size = 0x12000, scoped, tag = 'internal scratch']
  %s0 = inlined_call_operand.vmem [shape: f32[128,256], index: 0, kind: input, shape index: {}]
  %s1 = inlined_call_operand.vmem [shape: f32[256,64], index: 1, kind: input, shape index: {}]
  %s2 = inlined_call_operand.hbm [shape: f32[64,256], index: 2, kind: input, shape index: {}]
  %s3 = inlined_call_operand.vmem [shape: f32[4,64], index: 3, kind: input, shape index: {}]
  %s4 = inlined_call_operand.vmem [shape: f32[4,64,64], index: 4, kind: input, shape index: {}]
  %s5 = inlined_call_operand.vmem [shape: f32[64,4], index: 5, kind: input, shape index: {}]
  %s6 = inlined_call_operand.vmem [shape: f32[64,4], index: 6, kind: input, shape index: {}]
  %s7 = inlined_call_operand.hbm [shape: f32[128,256], index: 7, kind: output, shape index: {}]
  %s8 = sld [smem:[#allocation0]]
  $region65: #{tpu_custom_call.1} parent=0
    _
  %s10 = ssub.s32 1, %s8
  %s11 = scalar_select 0, %s10, %s8
  $region1: #{tpu_custom_call.1} parent=0
    #allocation2 [shape = 'u8[65536]{0}', space=vmem, size = 0x10000, scoped, tag = 'input window, operand 2, single buffered']
    #allocation3 [shape = 's32[2]{0}', space=sflag, size = 0x8, scoped, tag = 'scoped memory for tpu_custom_call.1']
    #allocation4 [shape = 's32[2]{0}', space=sflag, size = 0x8, scoped, tag = 'scoped memory for tpu_custom_call.1']
    #allocation5 [shape = 'u8[131072]{0}', space=vmem, size = 0x20000, scoped, tag = 'output window, operand 0']
    %12 = vsyncpa [#allocation3], 0
    %13 = vsyncpa [#allocation4], 0
    %s14 = scalar_lea.sflag [#allocation4], 1
    %15 = vsyncpa %s14, 0
    loop: start=0, step=1, limit=4
    $region2: #{tpu_custom_call.1} parent=1 // loop_pre_header
      _
    $region3: #{tpu_custom_call.1} parent=1 // loop_header
      %s17 = sphi 0, %s21
      %p18 = scmp.ge.s32.totalorder %s17, 4
      %s27 = sphi 0, %s29
      %s30 = sphi 0, %s27
      %s31 = sphi 0, %s30
      %s47 = sphi 0, %s31
      %s51 = sphi 0, %s51
      %s53 = sphi 0, %s51
      %s54 = sphi 0, %s53
      %s68 = sphi 0, %s54
      %s72 = sphi 0, %s72
      %s74 = sphi 0, %s72
      %s75 = sphi 0, %s74
      %s89 = sphi 0, %s75
      %s93 = sphi 0, %s93
      %s95 = sphi 0, %s93
      %s96 = sphi 0, %s95
      %s110 = sphi 0, %s96
      %s114 = sphi 0, %s114
      %s116 = sphi 0, %s114
      %s117 = sphi 0, %s116
      %s131 = sphi 0, %s117
      %s135 = sphi 0, %s135
      %s137 = sphi 0, %s135
      %s138 = sphi 0, %s137
      %s152 = sphi 0, %s138
      %s156 = sphi 0, %s156
      %s158 = sphi 0, %s156
      %s159 = sphi 0, %s158
      %s173 = sphi 0, %s159
      %s179 = sphi 0, %s181
      %s182 = sphi 0, %s179
      %s183 = sphi 0, %s182
      %s199 = sphi 0, %s183
    $region4: #{tpu_custom_call.1} parent=1 // loop_header_branch
      %20 = sbr.rel (%p18) target = $region8
    $region5: #{tpu_custom_call.1} parent=1 // loop_body
      %s22 = ssub.s32 %s17, 1
      %s23 = ssub.s32 %s17, 2
      %s24 = sadd.s32 %s17, 1
      %s25 = ssub.s32 %s17, %s24
      %p26 = scmp.eq.s32.totalorder %s25, 0
      %s28 = sadd.s32 %s27, 1
      %s29 = scalar_select %p26, %s27, %s28
      %p32 = pneg %p26
      %p33 = scmp.eq.s32.totalorder %s17, 1
      %p34 = por %p32, %p33
      %p35 = scmp.ne.s32.totalorder %s27, %s30
      %p36 = scmp.eq.s32.totalorder %s17, 0
      %p37 = por %p35, %p36
      %p38 = scmp.ne.s32.totalorder %s27, %s30
      %p39 = scmp.eq.s32.totalorder %s22, 1
      %p40 = por %p38, %p39
      %p41 = scmp.ne.s32.totalorder %s30, %s31
      %p42 = scmp.eq.s32.totalorder %s22, 0
      %p43 = por %p41, %p42
      %p44 = scmp.ne.s32.totalorder %s30, %s31
      %p45 = scmp.eq.s32.totalorder %s23, 1
      %p46 = por %p44, %p45
      %p48 = scmp.ne.s32.totalorder %s31, %s47
      %p49 = scmp.eq.s32.totalorder %s23, 0
      %p50 = por %p48, %p49
      %s52 = sadd.s32 %s51, 1
      %p55 = scmp.eq.s32.totalorder %s17, 1
      %p56 = scmp.ne.s32.totalorder %s51, %s53
      %p57 = scmp.eq.s32.totalorder %s17, 0
      %p58 = por %p56, %p57
      %p59 = scmp.ne.s32.totalorder %s51, %s53
      %p60 = scmp.eq.s32.totalorder %s22, 1
      %p61 = por %p59, %p60
      %p62 = scmp.ne.s32.totalorder %s53, %s54
      %p63 = scmp.eq.s32.totalorder %s22, 0
      %p64 = por %p62, %p63
      %p65 = scmp.ne.s32.totalorder %s53, %s54
      %p66 = scmp.eq.s32.totalorder %s23, 1
      %p67 = por %p65, %p66
      %p69 = scmp.ne.s32.totalorder %s54, %s68
      %p70 = scmp.eq.s32.totalorder %s23, 0
      %p71 = por %p69, %p70
      %s73 = sadd.s32 %s72, 1
      %p76 = scmp.eq.s32.totalorder %s17, 1
      %p77 = scmp.ne.s32.totalorder %s72, %s74
      %p78 = scmp.eq.s32.totalorder %s17, 0
      %p79 = por %p77, %p78
      %p80 = scmp.ne.s32.totalorder %s72, %s74
      %p81 = scmp.eq.s32.totalorder %s22, 1
      %p82 = por %p80, %p81
      %p83 = scmp.ne.s32.totalorder %s74, %s75
      %p84 = scmp.eq.s32.totalorder %s22, 0
      %p85 = por %p83, %p84
      %p86 = scmp.ne.s32.totalorder %s74, %s75
      %p87 = scmp.eq.s32.totalorder %s23, 1
      %p88 = por %p86, %p87
      %p90 = scmp.ne.s32.totalorder %s75, %s89
      %p91 = scmp.eq.s32.totalorder %s23, 0
      %p92 = por %p90, %p91
      %s94 = sadd.s32 %s93, 1
      %p97 = scmp.eq.s32.totalorder %s17, 1
      %p98 = scmp.ne.s32.totalorder %s93, %s95
      %p99 = scmp.eq.s32.totalorder %s17, 0
      %p100 = por %p98, %p99
      %p101 = scmp.ne.s32.totalorder %s93, %s95
      %p102 = scmp.eq.s32.totalorder %s22, 1
      %p103 = por %p101, %p102
      %p104 = scmp.ne.s32.totalorder %s95, %s96
      %p105 = scmp.eq.s32.totalorder %s22, 0
      %p106 = por %p104, %p105
      %p107 = scmp.ne.s32.totalorder %s95, %s96
      %p108 = scmp.eq.s32.totalorder %s23, 1
      %p109 = por %p107, %p108
      %p111 = scmp.ne.s32.totalorder %s96, %s110
      %p112 = scmp.eq.s32.totalorder %s23, 0
      %p113 = por %p111, %p112
      %s115 = sadd.s32 %s114, 1
      %p118 = scmp.eq.s32.totalorder %s17, 1
      %p119 = scmp.ne.s32.totalorder %s114, %s116
      %p120 = scmp.eq.s32.totalorder %s17, 0
      %p121 = por %p119, %p120
      %p122 = scmp.ne.s32.totalorder %s114, %s116
      %p123 = scmp.eq.s32.totalorder %s22, 1
      %p124 = por %p122, %p123
      %p125 = scmp.ne.s32.totalorder %s116, %s117
      %p126 = scmp.eq.s32.totalorder %s22, 0
      %p127 = por %p125, %p126
      %p128 = scmp.ne.s32.totalorder %s116, %s117
      %p129 = scmp.eq.s32.totalorder %s23, 1
      %p130 = por %p128, %p129
      %p132 = scmp.ne.s32.totalorder %s117, %s131
      %p133 = scmp.eq.s32.totalorder %s23, 0
      %p134 = por %p132, %p133
      %s136 = sadd.s32 %s135, 1
      %p139 = scmp.eq.s32.totalorder %s17, 1
      %p140 = scmp.ne.s32.totalorder %s135, %s137
      %p141 = scmp.eq.s32.totalorder %s17, 0
      %p142 = por %p140, %p141
      %p143 = scmp.ne.s32.totalorder %s135, %s137
      %p144 = scmp.eq.s32.totalorder %s22, 1
      %p145 = por %p143, %p144
      %p146 = scmp.ne.s32.totalorder %s137, %s138
      %p147 = scmp.eq.s32.totalorder %s22, 0
      %p148 = por %p146, %p147
      %p149 = scmp.ne.s32.totalorder %s137, %s138
      %p150 = scmp.eq.s32.totalorder %s23, 1
      %p151 = por %p149, %p150
      %p153 = scmp.ne.s32.totalorder %s138, %s152
      %p154 = scmp.eq.s32.totalorder %s23, 0
      %p155 = por %p153, %p154
      %s157 = sadd.s32 %s156, 1
      %p160 = scmp.eq.s32.totalorder %s17, 1
      %p161 = scmp.ne.s32.totalorder %s156, %s158
      %p162 = scmp.eq.s32.totalorder %s17, 0
      %p163 = por %p161, %p162
      %p164 = scmp.ne.s32.totalorder %s156, %s158
      %p165 = scmp.eq.s32.totalorder %s22, 1
      %p166 = por %p164, %p165
      %p167 = scmp.ne.s32.totalorder %s158, %s159
      %p168 = scmp.eq.s32.totalorder %s22, 0
      %p169 = por %p167, %p168
      %p170 = scmp.ne.s32.totalorder %s158, %s159
      %p171 = scmp.eq.s32.totalorder %s23, 1
      %p172 = por %p170, %p171
      %p174 = scmp.ne.s32.totalorder %s159, %s173
      %p175 = scmp.eq.s32.totalorder %s23, 0
      %p176 = por %p174, %p175
      %s177 = ssub.s32 %s17, %s24
      %p178 = scmp.eq.s32.totalorder %s177, 0
      %s180 = sadd.s32 %s179, 1
      %s181 = scalar_select %p178, %s179, %s180
      %p184 = pneg %p178
      %p185 = scmp.eq.s32.totalorder %s17, 1
      %p186 = por %p184, %p185
      %p187 = scmp.ne.s32.totalorder %s179, %s182
      %p188 = scmp.eq.s32.totalorder %s17, 0
      %p189 = por %p187, %p188
      %p190 = scmp.ne.s32.totalorder %s179, %s182
      %p191 = scmp.eq.s32.totalorder %s22, 1
      %p192 = por %p190, %p191
      %p193 = scmp.ne.s32.totalorder %s182, %s183
      %p194 = scmp.eq.s32.totalorder %s22, 0
      %p195 = por %p193, %p194
      %p196 = scmp.ne.s32.totalorder %s182, %s183
      %p197 = scmp.eq.s32.totalorder %s23, 1
      %p198 = por %p196, %p197
      %p200 = scmp.ne.s32.totalorder %s183, %s199
      %p201 = scmp.eq.s32.totalorder %s23, 0
      %p202 = por %p200, %p201
      %p203 = scmp.le.s32.totalorder 1, %s17
      %p204 = scmp.lt.s32.totalorder %s17, 3
      %p205 = pnand %p203, %p204
      %p206 = pneg %p205
      // Predicated region
      $region9: #{tpu_custom_call.1} parent=5 // pred_check
        _
      $region10: #{tpu_custom_call.1} parent=5 // pred_check_branch
        %208 = sbr.rel (%p205) target = $region12
      $region11: #{tpu_custom_call.1} parent=5 // pred_region
        %s209 = ssub.s32 %s17, 1
        // Predicated region
        $region13: #{tpu_custom_call.1} parent=11 // pred_check
          %p210 = pneg %p64
        $region14: #{tpu_custom_call.1} parent=11 // pred_check_branch
          %212 = sbr.rel (%p210) target = $region16
        $region15: #{tpu_custom_call.1} parent=11 // pred_region
          _
        $region16: #{tpu_custom_call.1} parent=11 // pred_fallthru
          _
        // Predicated region
        $region17: #{tpu_custom_call.1} parent=11 // pred_check
          %p213 = pneg %p85
        $region18: #{tpu_custom_call.1} parent=11 // pred_check_branch
          %215 = sbr.rel (%p213) target = $region20
        $region19: #{tpu_custom_call.1} parent=11 // pred_region
          %s217 = ssub.s32 2048, 2048
          %218 = vsyncadd [#allocation3], %s217
          %s219 = sshll.u32 [#allocation2], 4
          %s220 = int_to_ptr.vmem [resolvable:$true] %s219
          %225 = dma.hbm_to_vmem [thread:$0]  %s2, 2048, %s220, [#allocation3], 256, 256, 16
        $region20: #{tpu_custom_call.1} parent=11 // pred_fallthru
          _
        // Predicated region
        $region21: #{tpu_custom_call.1} parent=11 // pred_check
          %p226 = pneg %p106
        $region22: #{tpu_custom_call.1} parent=11 // pred_check_branch
          %228 = sbr.rel (%p226) target = $region24
        $region23: #{tpu_custom_call.1} parent=11 // pred_region
          _
        $region24: #{tpu_custom_call.1} parent=11 // pred_fallthru
          _
        // Predicated region
        $region25: #{tpu_custom_call.1} parent=11 // pred_check
          %p229 = pneg %p127
        $region26: #{tpu_custom_call.1} parent=11 // pred_check_branch
          %231 = sbr.rel (%p229) target = $region28
        $region27: #{tpu_custom_call.1} parent=11 // pred_region
          _
        $region28: #{tpu_custom_call.1} parent=11 // pred_fallthru
          _
        // Predicated region
        $region29: #{tpu_custom_call.1} parent=11 // pred_check
          %p232 = pneg %p148
        $region30: #{tpu_custom_call.1} parent=11 // pred_check_branch
          %234 = sbr.rel (%p232) target = $region32
        $region31: #{tpu_custom_call.1} parent=11 // pred_region
          _
        $region32: #{tpu_custom_call.1} parent=11 // pred_fallthru
          _
        // Predicated region
        $region33: #{tpu_custom_call.1} parent=11 // pred_check
          %p235 = pneg %p169
        $region34: #{tpu_custom_call.1} parent=11 // pred_check_branch
          %237 = sbr.rel (%p235) target = $region36
        $region35: #{tpu_custom_call.1} parent=11 // pred_region
          _
        $region36: #{tpu_custom_call.1} parent=11 // pred_fallthru
          _
      $region12: #{tpu_custom_call.1} parent=5 // pred_fallthru
        _
      %p238 = scmp.lt.s32.totalorder %s17, 2
      // Predicated region
      $region37: #{tpu_custom_call.1} parent=5 // pred_check
        %p239 = pneg %p238
      $region38: #{tpu_custom_call.1} parent=5 // pred_check_branch
        %241 = sbr.rel (%p239) target = $region40
      $region39: #{tpu_custom_call.1} parent=5 // pred_region
        // Predicated region
        $region41: #{tpu_custom_call.1} parent=39 // pred_check
          %p242 = pneg %p37
        $region42: #{tpu_custom_call.1} parent=39 // pred_check_branch
          %244 = sbr.rel (%p242) target = $region44
        $region43: #{tpu_custom_call.1} parent=39 // pred_region
          %s245 = smul.u32 8, %s17
          %p246 = scmp.lt.s32.totalorder %s245, 15
          %s247 = scalar_select %p246, %s245, 15
          %s248 = smul.addr %s247, 2
          %s249 = smul.addr %s248, 8
          %s250 = scalar_lea.vmem %s0, %s249
          %s251 = smul.u32 8, %s17
        $region44: #{tpu_custom_call.1} parent=39 // pred_fallthru
          _
      $region40: #{tpu_custom_call.1} parent=5 // pred_fallthru
        _
      %p252 = scmp.le.s32.totalorder 1, %s17
      %p253 = scmp.lt.s32.totalorder %s17, 3
      %p254 = pnand %p252, %p253
      %p255 = pneg %p254
      // Predicated region
      $region45: #{tpu_custom_call.1} parent=5 // pred_check
        _
      $region46: #{tpu_custom_call.1} parent=5 // pred_check_branch
        %257 = sbr.rel (%p254) target = $region48
      $region47: #{tpu_custom_call.1} parent=5 // pred_region
        %s258 = ssub.s32 %s17, 1
        // Predicated region
        $region49: #{tpu_custom_call.1} parent=47 // pred_check
          %p259 = pneg %p85
        $region50: #{tpu_custom_call.1} parent=47 // pred_check_branch
          %261 = sbr.rel (%p259) target = $region52
        $region51: #{tpu_custom_call.1} parent=47 // pred_region
          %262 = dma.done [#allocation3], 2048
        $region52: #{tpu_custom_call.1} parent=47 // pred_fallthru
          _
        %s263 = smul.u32 8, %s22
        %p264 = scmp.lt.s32.totalorder %s263, 15
        %s265 = scalar_select %p264, %s263, 15
        %s266 = smul.addr %s265, 2
        %s267 = smul.addr %s266, 8
        %s268 = scalar_lea.vmem %s0, %s267
        %p269 = pneg %p43
        %p270 = pneg %p40
        %p271 = pneg %p64
        %p272 = pneg %p61
        %p273 = pneg %p85
        %p274 = pneg %p82
        %p275 = pneg %p106
        %p276 = pneg %p103
        %p277 = pneg %p127
        %p278 = pneg %p124
        %p279 = pneg %p148
        %p280 = pneg %p145
        %p281 = pneg %p169
        %p282 = pneg %p166
        %p283 = pneg %p195
        %p284 = pneg %p192
        %s285 = sand.u32 %s182, 1
        %s286 = scalar_lea.sflag [#allocation4], %s285
        %s287 = sand.u32 %s182, 1
        %s288 = smul.addr %s287, 128
        %s289 = scalar_lea.vmem [#allocation5], %s288
        %s290 = smul.u32 8, %s22
        %p291 = scmp.lt.s32.totalorder %s290, 15
        %s292 = scalar_select %p291, %s290, 15
        %s293 = smul.addr %s292, 2
        %s294 = smul.addr %s293, 8
        %s295 = scalar_lea.vmem %s0, %s294
        %s296 = smul.u32 8, %s22
        %s297 = smul.u32 8, %s22
        %v298 = vld [vmem:[%s295] sm:$0xff]
        %v299 = vld [vmem:[%s295 + $0x8] sm:$0xff]
        %v300 = vld [vmem:[%s295 + $0x10] sm:$0xff]
        %v301 = vld [vmem:[%s295 + $0x18] sm:$0xff]
        %v302 = vld [vmem:[%s295 + $0x20] sm:$0xff]
        %v303 = vld [vmem:[%s295 + $0x28] sm:$0xff]
        %v304 = vld [vmem:[%s295 + $0x30] sm:$0xff]
        %v305 = vld [vmem:[%s295 + $0x38] sm:$0xff]
        %v306 = vld [vmem:[%s295 + $0x40] sm:$0xff]
        %v307 = vld [vmem:[%s295 + $0x48] sm:$0xff]
        %v308 = vld [vmem:[%s295 + $0x50] sm:$0xff]
        %v309 = vld [vmem:[%s295 + $0x58] sm:$0xff]
        %v310 = vld [vmem:[%s295 + $0x60] sm:$0xff]
        %v311 = vld [vmem:[%s295 + $0x68] sm:$0xff]
        %v312 = vld [vmem:[%s295 + $0x70] sm:$0xff]
        %v313 = vld [vmem:[%s295 + $0x78] sm:$0xff]
        %v314 = vld [vmem:[%s1] sm:$0xff]
        %v315 = vld [vmem:[%s1 + $0x8] sm:$0xff]
        %v316 = vld [vmem:[%s1 + $0x10] sm:$0xff]
        %v317 = vld [vmem:[%s1 + $0x18] sm:$0xff]
        %v318 = vld [vmem:[%s1 + $0x20] sm:$0xff]
        %v319 = vld [vmem:[%s1 + $0x28] sm:$0xff]
        %v320 = vld [vmem:[%s1 + $0x30] sm:$0xff]
        %v321 = vld [vmem:[%s1 + $0x38] sm:$0xff]
        %v322 = vld [vmem:[%s1 + $0x40] sm:$0xff]
        %v323 = vld [vmem:[%s1 + $0x48] sm:$0xff]
        %v324 = vld [vmem:[%s1 + $0x50] sm:$0xff]
        %v325 = vld [vmem:[%s1 + $0x58] sm:$0xff]
        %v326 = vld [vmem:[%s1 + $0x60] sm:$0xff]
        %v327 = vld [vmem:[%s1 + $0x68] sm:$0xff]
        %v328 = vld [vmem:[%s1 + $0x70] sm:$0xff]
        %v329 = vld [vmem:[%s1 + $0x78] sm:$0xff]
        %v330 = vld [vmem:[%s1 + $0x80] sm:$0xff]
        %v331 = vld [vmem:[%s1 + $0x88] sm:$0xff]
        %v332 = vld [vmem:[%s1 + $0x90] sm:$0xff]
        %v333 = vld [vmem:[%s1 + $0x98] sm:$0xff]
        %v334 = vld [vmem:[%s1 + $0xa0] sm:$0xff]
        %v335 = vld [vmem:[%s1 + $0xa8] sm:$0xff]
        %v336 = vld [vmem:[%s1 + $0xb0] sm:$0xff]
        %v337 = vld [vmem:[%s1 + $0xb8] sm:$0xff]
        %v338 = vld [vmem:[%s1 + $0xc0] sm:$0xff]
        %v339 = vld [vmem:[%s1 + $0xc8] sm:$0xff]
        %v340 = vld [vmem:[%s1 + $0xd0] sm:$0xff]
        %v341 = vld [vmem:[%s1 + $0xd8] sm:$0xff]
        %v342 = vld [vmem:[%s1 + $0xe0] sm:$0xff]
        %v343 = vld [vmem:[%s1 + $0xe8] sm:$0xff]
        %v344 = vld [vmem:[%s1 + $0xf0] sm:$0xff]
        %v345 = vld [vmem:[%s1 + $0xf8] sm:$0xff]
        %346 = vmatprep.subr.mxu0 0.0
        %347 = vmatpush1.msra.mxu0 %v314
        %348 = vmatprep.subr.mxu0 0.0
        %349 = vmatpush1.msra.mxu0 %v315
        %350 = vmatprep.subr.mxu0 0.0
        %351 = vmatpush1.msra.mxu0 %v316
        %352 = vmatprep.subr.mxu0 0.0
        %353 = vmatpush1.msra.mxu0 %v317
        %354 = vmatprep.subr.mxu0 0.0
        %355 = vmatpush1.msra.mxu0 %v318
        %356 = vmatprep.subr.mxu0 0.0
        %357 = vmatpush1.msra.mxu0 %v319
        %358 = vmatprep.subr.mxu0 0.0
        %359 = vmatpush1.msra.mxu0 %v320
        %360 = vmatprep.subr.mxu0 0.0
        %361 = vmatpush1.msra.mxu0 %v321
        %362 = vmatprep.subr.mxu0 0.0
        %363 = vmatpush1.msra.mxu0 %v322
        %364 = vmatprep.subr.mxu0 0.0
        %365 = vmatpush1.msra.mxu0 %v323
        %366 = vmatprep.subr.mxu0 0.0
        %367 = vmatpush1.msra.mxu0 %v324
        %368 = vmatprep.subr.mxu0 0.0
        %369 = vmatpush1.msra.mxu0 %v325
        %370 = vmatprep.subr.mxu0 0.0
        %371 = vmatpush1.msra.mxu0 %v326
        %372 = vmatprep.subr.mxu0 0.0
        %373 = vmatpush1.msra.mxu0 %v327
        %374 = vmatprep.subr.mxu0 0.0
        %375 = vmatpush1.msra.mxu0 %v328
        %376 = vmatprep.subr.mxu0 0.0
        %377 = vmatpush1.msra.mxu0 %v329
        %378 = vmatprep.subr.mxu0 0.0
        %379 = vmatpush1.msra.mxu0 %v330
        %380 = vmatprep.subr.mxu0 0.0
        %381 = vmatpush1.msra.mxu0 %v331
        %382 = vmatprep.subr.mxu0 0.0
        %383 = vmatpush1.msra.mxu0 %v332
        %384 = vmatprep.subr.mxu0 0.0
        %385 = vmatpush1.msra.mxu0 %v333
        %386 = vmatprep.subr.mxu0 0.0
        %387 = vmatpush1.msra.mxu0 %v334
        %388 = vmatprep.subr.mxu0 0.0
        %389 = vmatpush1.msra.mxu0 %v335
        %390 = vmatprep.subr.mxu0 0.0
        %391 = vmatpush1.msra.mxu0 %v336
        %392 = vmatprep.subr.mxu0 0.0
        %393 = vmatpush1.msra.mxu0 %v337
        %394 = vmatprep.subr.mxu0 0.0
        %395 = vmatpush1.msra.mxu0 %v338
        %396 = vmatprep.subr.mxu0 0.0
        %397 = vmatpush1.msra.mxu0 %v339
        %398 = vmatprep.subr.mxu0 0.0
        %399 = vmatpush1.msra.mxu0 %v340
        %400 = vmatprep.subr.mxu0 0.0
        %401 = vmatpush1.msra.mxu0 %v341
        %402 = vmatprep.subr.mxu0 0.0
        %403 = vmatpush1.msra.mxu0 %v342
        %404 = vmatprep.subr.mxu0 0.0
        %405 = vmatpush1.msra.mxu0 %v343
        %406 = vmatprep.subr.mxu0 0.0
        %407 = vmatpush1.msra.mxu0 %v344
        %408 = vmatprep.subr.mxu0 0.0
        %409 = vmatpush1.msra.mxu0 %v345
        %410 = vmatprep.mubr.f32.mxu0 %v299
        %411 = vmatmul.mubr.f32.gmra.mrb[0].mxu0 %v298
        %v412 = vpop.f32.mrb[0].mxu0
        %v413 = vadd.f32 0.0, %v412
        %v414 = vpop.f32.mrb[0].mxu0
        %415 = vmatprep.mubr.f32.mxu0 %v301
        %416 = vmatmul.mubr.f32.gmra.mrb[0].mxu0 %v300
        %v417 = vpop.f32.mrb[0].mxu0
        %v418 = vadd.f32 0.0, %v417
        %v419 = vpop.f32.mrb[0].mxu0
        %420 = vmatprep.mubr.f32.mxu0 %v303
        %421 = vmatmul.mubr.f32.gmra.mrb[0].mxu0 %v302
        %v422 = vpop.f32.mrb[0].mxu0
        %v423 = vadd.f32 0.0, %v422
        %v424 = vpop.f32.mrb[0].mxu0
        %425 = vmatprep.mubr.f32.mxu0 %v305
        %426 = vmatmul.mubr.f32.gmra.mrb[0].mxu0 %v304
        %v427 = vpop.f32.mrb[0].mxu0
        %v428 = vadd.f32 0.0, %v427
        %v429 = vpop.f32.mrb[0].mxu0
        %430 = vmatprep.mubr.f32.mxu0 %v307
        %431 = vmatmul.mubr.f32.gmra.mrb[0].mxu0 %v306
        %v432 = vpop.f32.mrb[0].mxu0
        %v433 = vadd.f32 0.0, %v432
        %v434 = vpop.f32.mrb[0].mxu0
        %435 = vmatprep.mubr.f32.mxu0 %v309
        %436 = vmatmul.mubr.f32.gmra.mrb[0].mxu0 %v308
        %v437 = vpop.f32.mrb[0].mxu0
        %v438 = vadd.f32 0.0, %v437
        %v439 = vpop.f32.mrb[0].mxu0
        %440 = vmatprep.mubr.f32.mxu0 %v311
        %441 = vmatmul.mubr.f32.gmra.mrb[0].mxu0 %v310
        %v442 = vpop.f32.mrb[0].mxu0
        %v443 = vadd.f32 0.0, %v442
        %v444 = vpop.f32.mrb[0].mxu0
        %445 = vmatprep.mubr.f32.mxu0 %v313
        %446 = vmatmul.mubr.f32.gmra.mrb[0].mxu0 %v312
        %v447 = vpop.f32.mrb[0].mxu0
        %v448 = vadd.f32 0.0, %v447
        %v449 = vpop.f32.mrb[0].mxu0
        %450 = vdwg.mxu0
        %v451 = vld [vmem:[%s3] sm:$0xf]
        %v452 = vld [vmem:[%s4] sm:$0xff]
        %v453 = vld [vmem:[%s4 + $0x8] sm:$0xff]
        %v454 = vld [vmem:[%s4 + $0x10] sm:$0xff]
        %v455 = vld [vmem:[%s4 + $0x18] sm:$0xff]
        %v456 = vld [vmem:[%s4 + $0x20] sm:$0xff]
        %v457 = vld [vmem:[%s4 + $0x28] sm:$0xff]
        %v458 = vld [vmem:[%s4 + $0x30] sm:$0xff]
        %v459 = vld [vmem:[%s4 + $0x38] sm:$0xff]
        %v460 = vlaneseq
        %v461 = vshrl.u32 %v460, 7
        %v462 = vsub.s32 0, %v461
        %v463 = vrot.slane %v451, %v462
        %v464 = vmul.f32 %v413, %v463
        %v465 = vmul.f32 %v418, %v463
        %v466 = vmul.f32 %v423, %v463
        %v467 = vmul.f32 %v428, %v463
        %v468 = vmul.f32 %v433, %v463
        %v469 = vmul.f32 %v438, %v463
        %v470 = vmul.f32 %v443, %v463
        %v471 = vmul.f32 %v448, %v463
        %s472 = scalar_lea.vmem %s4, 64
        %v473 = vld [vmem:[%s472] sm:$0xff]
        %v474 = vld [vmem:[%s472 + $0x8] sm:$0xff]
        %v475 = vld [vmem:[%s472 + $0x10] sm:$0xff]
        %v476 = vld [vmem:[%s472 + $0x18] sm:$0xff]
        %v477 = vld [vmem:[%s472 + $0x20] sm:$0xff]
        %v478 = vld [vmem:[%s472 + $0x28] sm:$0xff]
        %v479 = vld [vmem:[%s472 + $0x30] sm:$0xff]
        %v480 = vld [vmem:[%s472 + $0x38] sm:$0xff]
        %v481 = vlaneseq
        %v482 = vshrl.u32 %v481, 7
        %v483 = vsub.s32 1, %v482
        %v484 = vrot.slane %v451, %v483
        %v485 = vmul.f32 %v413, %v484
        %v486 = vmul.f32 %v418, %v484
        %v487 = vmul.f32 %v423, %v484
        %v488 = vmul.f32 %v428, %v484
        %v489 = vmul.f32 %v433, %v484
        %v490 = vmul.f32 %v438, %v484
        %v491 = vmul.f32 %v443, %v484
        %v492 = vmul.f32 %v448, %v484
        %vm493 = vcmask 523264
        %v495 = vsel %vm493, %v473, 0
        %v498 = vsel %vm493, %v474, 0
        %v501 = vsel %vm493, %v475, 0
        %v504 = vsel %vm493, %v476, 0
        %v507 = vsel %vm493, %v477, 0
        %v510 = vsel %vm493, %v478, 0
        %v513 = vsel %vm493, %v479, 0
        %v516 = vsel %vm493, %v480, 0
        %518 = vmatprep.subr.mxu0 0.0
        %519 = vmatpush1.msra.mxu0 %v485
        %520 = vmatprep.subr.mxu0 0.0
        %521 = vmatpush1.msra.mxu0 %v486
        %522 = vmatprep.subr.mxu0 0.0
        %523 = vmatpush1.msra.mxu0 %v487
        %524 = vmatprep.subr.mxu0 0.0
        %525 = vmatpush1.msra.mxu0 %v488
        %526 = vmatprep.subr.mxu0 0.0
        %527 = vmatpush1.msra.mxu0 %v489
        %528 = vmatprep.subr.mxu0 0.0
        %529 = vmatpush1.msra.mxu0 %v490
        %530 = vmatprep.subr.mxu0 0.0
        %531 = vmatpush1.msra.mxu0 %v491
        %532 = vmatprep.subr.mxu0 0.0
        %533 = vmatpush1.msra.mxu0 %v492
        %534 = vmatprep.subr.mxu0 0.0
        %535 = vmatpush1.msra.mxu0 0.0
        %536 = vmatprep.subr.mxu0 0.0
        %537 = vmatpush1.msra.mxu0 0.0
        %538 = vmatprep.subr.mxu0 0.0
        %539 = vmatpush1.msra.mxu0 0.0
        %540 = vmatprep.subr.mxu0 0.0
        %541 = vmatpush1.msra.mxu0 0.0
        %542 = vmatprep.subr.mxu0 0.0
        %543 = vmatpush1.msra.mxu0 0.0
        %544 = vmatprep.subr.mxu0 0.0
        %545 = vmatpush1.msra.mxu0 0.0
        %546 = vmatprep.subr.mxu0 0.0
        %547 = vmatpush1.msra.mxu0 0.0
        %548 = vmatprep.subr.mxu0 0.0
        %549 = vmatpush1.msra.mxu0 0.0
        %550 = vmatprep.subr.mxu0 0.0
        %551 = vmatpush1.msra.mxu0 0.0
        %552 = vmatprep.subr.mxu0 0.0
        %553 = vmatpush1.msra.mxu0 0.0
        %554 = vmatprep.subr.mxu0 0.0
        %555 = vmatpush1.msra.mxu0 0.0
        %556 = vmatprep.subr.mxu0 0.0
        %557 = vmatpush1.msra.mxu0 0.0
        %558 = vmatprep.subr.mxu0 0.0
        %559 = vmatpush1.msra.mxu0 0.0
        %560 = vmatprep.subr.mxu0 0.0
        %561 = vmatpush1.msra.mxu0 0.0
        %562 = vmatprep.subr.mxu0 0.0
        %563 = vmatpush1.msra.mxu0 0.0
        %564 = vmatprep.subr.mxu0 0.0
        %565 = vmatpush1.msra.mxu0 0.0
        %566 = vmatprep.subr.mxu0 0.0
        %567 = vmatpush1.msra.mxu0 0.0
        %568 = vmatprep.subr.mxu0 0.0
        %569 = vmatpush1.msra.mxu0 0.0
        %570 = vmatprep.subr.mxu0 0.0
        %571 = vmatpush1.msra.mxu0 0.0
        %572 = vmatprep.subr.mxu0 0.0
        %573 = vmatpush1.msra.mxu0 0.0
        %574 = vmatprep.subr.mxu0 0.0
        %575 = vmatpush1.msra.mxu0 0.0
        %576 = vmatprep.subr.mxu0 0.0
        %577 = vmatpush1.msra.mxu0 0.0
        %578 = vmatprep.subr.mxu0 0.0
        %579 = vmatpush1.msra.mxu0 0.0
        %580 = vmatprep.subr.mxu0 0.0
        %581 = vmatpush1.msra.mxu0 0.0
        %582 = vmatprep.mubr.f32.mxu0 0.0
        %583 = vmatmul.mubr.f32.gmra.mrb[0].mxu0 %v495
        %v584 = vpop.f32.mrb[0].mxu0
        %v585 = vadd.f32 0.0, %v584
        %v586 = vpop.f32.mrb[0].mxu0
        %587 = vmatprep.mubr.f32.mxu0 0.0
        %588 = vmatmul.mubr.f32.gmra.mrb[0].mxu0 %v498
        %v589 = vpop.f32.mrb[0].mxu0
        %v590 = vadd.f32 0.0, %v589
        %v591 = vpop.f32.mrb[0].mxu0
        %592 = vmatprep.mubr.f32.mxu0 0.0
        %593 = vmatmul.mubr.f32.gmra.mrb[0].mxu0 %v501
        %v594 = vpop.f32.mrb[0].mxu0
        %v595 = vadd.f32 0.0, %v594
        %v596 = vpop.f32.mrb[0].mxu0
        %597 = vmatprep.mubr.f32.mxu0 0.0
        %598 = vmatmul.mubr.f32.gmra.mrb[0].mxu0 %v504
        %v599 = vpop.f32.mrb[0].mxu0
        %v600 = vadd.f32 0.0, %v599
        %v601 = vpop.f32.mrb[0].mxu0
        %602 = vmatprep.mubr.f32.mxu0 0.0
        %603 = vmatmul.mubr.f32.gmra.mrb[0].mxu0 %v507
        %v604 = vpop.f32.mrb[0].mxu0
        %v605 = vadd.f32 0.0, %v604
        %v606 = vpop.f32.mrb[0].mxu0
        %607 = vmatprep.mubr.f32.mxu0 0.0
        %608 = vmatmul.mubr.f32.gmra.mrb[0].mxu0 %v510
        %v609 = vpop.f32.mrb[0].mxu0
        %v610 = vadd.f32 0.0, %v609
        %v611 = vpop.f32.mrb[0].mxu0
        %612 = vmatprep.mubr.f32.mxu0 0.0
        %613 = vmatmul.mubr.f32.gmra.mrb[0].mxu0 %v513
        %v614 = vpop.f32.mrb[0].mxu0
        %v615 = vadd.f32 0.0, %v614
        %v616 = vpop.f32.mrb[0].mxu0
        %617 = vmatprep.mubr.f32.mxu0 0.0
        %618 = vmatmul.mubr.f32.gmra.mrb[0].mxu0 %v516
        %v619 = vpop.f32.mrb[0].mxu0
        %v620 = vadd.f32 0.0, %v619
        %v621 = vpop.f32.mrb[0].mxu0
        %622 = vdwg.mxu0
        %v624 = vsel %vm493, %v452, 0
        %v627 = vsel %vm493, %v453, 0
        %v630 = vsel %vm493, %v454, 0
        %v633 = vsel %vm493, %v455, 0
        %v636 = vsel %vm493, %v456, 0
        %v639 = vsel %vm493, %v457, 0
        %v642 = vsel %vm493, %v458, 0
        %v645 = vsel %vm493, %v459, 0
        %647 = vmatprep.subr.mxu0 0.0
        %648 = vmatpush1.msra.mxu0 %v464
        %649 = vmatprep.subr.mxu0 0.0
        %650 = vmatpush1.msra.mxu0 %v465
        %651 = vmatprep.subr.mxu0 0.0
        %652 = vmatpush1.msra.mxu0 %v466
        %653 = vmatprep.subr.mxu0 0.0
        %654 = vmatpush1.msra.mxu0 %v467
        %655 = vmatprep.subr.mxu0 0.0
        %656 = vmatpush1.msra.mxu0 %v468
        %657 = vmatprep.subr.mxu0 0.0
        %658 = vmatpush1.msra.mxu0 %v469
        %659 = vmatprep.subr.mxu0 0.0
        %660 = vmatpush1.msra.mxu0 %v470
        %661 = vmatprep.subr.mxu0 0.0
        %662 = vmatpush1.msra.mxu0 %v471
        %663 = vmatprep.subr.mxu0 0.0
        %664 = vmatpush1.msra.mxu0 0.0
        %665 = vmatprep.subr.mxu0 0.0
        %666 = vmatpush1.msra.mxu0 0.0
        %667 = vmatprep.subr.mxu0 0.0
        %668 = vmatpush1.msra.mxu0 0.0
        %669 = vmatprep.subr.mxu0 0.0
        %670 = vmatpush1.msra.mxu0 0.0
        %671 = vmatprep.subr.mxu0 0.0
        %672 = vmatpush1.msra.mxu0 0.0
        %673 = vmatprep.subr.mxu0 0.0
        %674 = vmatpush1.msra.mxu0 0.0
        %675 = vmatprep.subr.mxu0 0.0
        %676 = vmatpush1.msra.mxu0 0.0
        %677 = vmatprep.subr.mxu0 0.0
        %678 = vmatpush1.msra.mxu0 0.0
        %679 = vmatprep.subr.mxu0 0.0
        %680 = vmatpush1.msra.mxu0 0.0
        %681 = vmatprep.subr.mxu0 0.0
        %682 = vmatpush1.msra.mxu0 0.0
        %683 = vmatprep.subr.mxu0 0.0
        %684 = vmatpush1.msra.mxu0 0.0
        %685 = vmatprep.subr.mxu0 0.0
        %686 = vmatpush1.msra.mxu0 0.0
        %687 = vmatprep.subr.mxu0 0.0
        %688 = vmatpush1.msra.mxu0 0.0
        %689 = vmatprep.subr.mxu0 0.0
        %690 = vmatpush1.msra.mxu0 0.0
        %691 = vmatprep.subr.mxu0 0.0
        %692 = vmatpush1.msra.mxu0 0.0
        %693 = vmatprep.subr.mxu0 0.0
        %694 = vmatpush1.msra.mxu0 0.0
        %695 = vmatprep.subr.mxu0 0.0
        %696 = vmatpush1.msra.mxu0 0.0
        %697 = vmatprep.subr.mxu0 0.0
        %698 = vmatpush1.msra.mxu0 0.0
        %699 = vmatprep.subr.mxu0 0.0
        %700 = vmatpush1.msra.mxu0 0.0
        %701 = vmatprep.subr.mxu0 0.0
        %702 = vmatpush1.msra.mxu0 0.0
        %703 = vmatprep.subr.mxu0 0.0
        %704 = vmatpush1.msra.mxu0 0.0
        %705 = vmatprep.subr.mxu0 0.0
        %706 = vmatpush1.msra.mxu0 0.0
        %707 = vmatprep.subr.mxu0 0.0
        %708 = vmatpush1.msra.mxu0 0.0
        %709 = vmatprep.subr.mxu0 0.0
        %710 = vmatpush1.msra.mxu0 0.0
        %711 = vmatprep.mubr.f32.mxu0 0.0
        %712 = vmatmul.mubr.f32.gmra.mrb[0].mxu0 %v624
        %v713 = vpop.f32.mrb[0].mxu0
        %v714 = vadd.f32 %v585, %v713
        %v715 = vpop.f32.mrb[0].mxu0
        %716 = vmatprep.mubr.f32.mxu0 0.0
        %717 = vmatmul.mubr.f32.gmra.mrb[0].mxu0 %v627
        %v718 = vpop.f32.mrb[0].mxu0
        %v719 = vadd.f32 %v590, %v718
        %v720 = vpop.f32.mrb[0].mxu0
        %721 = vmatprep.mubr.f32.mxu0 0.0
        %722 = vmatmul.mubr.f32.gmra.mrb[0].mxu0 %v630
        %v723 = vpop.f32.mrb[0].mxu0
        %v724 = vadd.f32 %v595, %v723
        %v725 = vpop.f32.mrb[0].mxu0
        %726 = vmatprep.mubr.f32.mxu0 0.0
        %727 = vmatmul.mubr.f32.gmra.mrb[0].mxu0 %v633
        %v728 = vpop.f32.mrb[0].mxu0
        %v729 = vadd.f32 %v600, %v728
        %v730 = vpop.f32.mrb[0].mxu0
        %731 = vmatprep.mubr.f32.mxu0 0.0
        %732 = vmatmul.mubr.f32.gmra.mrb[0].mxu0 %v636
        %v733 = vpop.f32.mrb[0].mxu0
        %v734 = vadd.f32 %v605, %v733
        %v735 = vpop.f32.mrb[0].mxu0
        %736 = vmatprep.mubr.f32.mxu0 0.0
        %737 = vmatmul.mubr.f32.gmra.mrb[0].mxu0 %v639
        %v738 = vpop.f32.mrb[0].mxu0
        %v739 = vadd.f32 %v610, %v738
        %v740 = vpop.f32.mrb[0].mxu0
        %741 = vmatprep.mubr.f32.mxu0 0.0
        %742 = vmatmul.mubr.f32.gmra.mrb[0].mxu0 %v642
        %v743 = vpop.f32.mrb[0].mxu0
        %v744 = vadd.f32 %v615, %v743
        %v745 = vpop.f32.mrb[0].mxu0
        %746 = vmatprep.mubr.f32.mxu0 0.0
        %747 = vmatmul.mubr.f32.gmra.mrb[0].mxu0 %v645
        %v748 = vpop.f32.mrb[0].mxu0
        %v749 = vadd.f32 %v620, %v748
        %v750 = vpop.f32.mrb[0].mxu0
        %751 = vdwg.mxu0
        %s752 = scalar_lea.vmem %s4, 128
        %v753 = vld [vmem:[%s752] sm:$0xff]
        %v754 = vld [vmem:[%s752 + $0x8] sm:$0xff]
        %v755 = vld [vmem:[%s752 + $0x10] sm:$0xff]
        %v756 = vld [vmem:[%s752 + $0x18] sm:$0xff]
        %v757 = vld [vmem:[%s752 + $0x20] sm:$0xff]
        %v758 = vld [vmem:[%s752 + $0x28] sm:$0xff]
        %v759 = vld [vmem:[%s752 + $0x30] sm:$0xff]
        %v760 = vld [vmem:[%s752 + $0x38] sm:$0xff]
        %v761 = vlaneseq
        %v762 = vshrl.u32 %v761, 7
        %v763 = vsub.s32 2, %v762
        %v764 = vrot.slane %v451, %v763
        %v765 = vmul.f32 %v413, %v764
        %v766 = vmul.f32 %v418, %v764
        %v767 = vmul.f32 %v423, %v764
        %v768 = vmul.f32 %v428, %v764
        %v769 = vmul.f32 %v433, %v764
        %v770 = vmul.f32 %v438, %v764
        %v771 = vmul.f32 %v443, %v764
        %v772 = vmul.f32 %v448, %v764
        %v774 = vsel %vm493, %v753, 0
        %v777 = vsel %vm493, %v754, 0
        %v780 = vsel %vm493, %v755, 0
        %v783 = vsel %vm493, %v756, 0
        %v786 = vsel %vm493, %v757, 0
        %v789 = vsel %vm493, %v758, 0
        %v792 = vsel %vm493, %v759, 0
        %v795 = vsel %vm493, %v760, 0
        %797 = vmatprep.subr.mxu0 0.0
        %798 = vmatpush1.msra.mxu0 %v765
        %799 = vmatprep.subr.mxu0 0.0
        %800 = vmatpush1.msra.mxu0 %v766
        %801 = vmatprep.subr.mxu0 0.0
        %802 = vmatpush1.msra.mxu0 %v767
        %803 = vmatprep.subr.mxu0 0.0
        %804 = vmatpush1.msra.mxu0 %v768
        %805 = vmatprep.subr.mxu0 0.0
        %806 = vmatpush1.msra.mxu0 %v769
        %807 = vmatprep.subr.mxu0 0.0
        %808 = vmatpush1.msra.mxu0 %v770
        %809 = vmatprep.subr.mxu0 0.0
        %810 = vmatpush1.msra.mxu0 %v771
        %811 = vmatprep.subr.mxu0 0.0
        %812 = vmatpush1.msra.mxu0 %v772
        %813 = vmatprep.subr.mxu0 0.0
        %814 = vmatpush1.msra.mxu0 0.0
        %815 = vmatprep.subr.mxu0 0.0
        %816 = vmatpush1.msra.mxu0 0.0
        %817 = vmatprep.subr.mxu0 0.0
        %818 = vmatpush1.msra.mxu0 0.0
        %819 = vmatprep.subr.mxu0 0.0
        %820 = vmatpush1.msra.mxu0 0.0
        %821 = vmatprep.subr.mxu0 0.0
        %822 = vmatpush1.msra.mxu0 0.0
        %823 = vmatprep.subr.mxu0 0.0
        %824 = vmatpush1.msra.mxu0 0.0
        %825 = vmatprep.subr.mxu0 0.0
        %826 = vmatpush1.msra.mxu0 0.0
        %827 = vmatprep.subr.mxu0 0.0
        %828 = vmatpush1.msra.mxu0 0.0
        %829 = vmatprep.subr.mxu0 0.0
        %830 = vmatpush1.msra.mxu0 0.0
        %831 = vmatprep.subr.mxu0 0.0
        %832 = vmatpush1.msra.mxu0 0.0
        %833 = vmatprep.subr.mxu0 0.0
        %834 = vmatpush1.msra.mxu0 0.0
        %835 = vmatprep.subr.mxu0 0.0
        %836 = vmatpush1.msra.mxu0 0.0
        %837 = vmatprep.subr.mxu0 0.0
        %838 = vmatpush1.msra.mxu0 0.0
        %839 = vmatprep.subr.mxu0 0.0
        %840 = vmatpush1.msra.mxu0 0.0
        %841 = vmatprep.subr.mxu0 0.0
        %842 = vmatpush1.msra.mxu0 0.0
        %843 = vmatprep.subr.mxu0 0.0
        %844 = vmatpush1.msra.mxu0 0.0
        %845 = vmatprep.subr.mxu0 0.0
        %846 = vmatpush1.msra.mxu0 0.0
        %847 = vmatprep.subr.mxu0 0.0
        %848 = vmatpush1.msra.mxu0 0.0
        %849 = vmatprep.subr.mxu0 0.0
        %850 = vmatpush1.msra.mxu0 0.0
        %851 = vmatprep.subr.mxu0 0.0
        %852 = vmatpush1.msra.mxu0 0.0
        %853 = vmatprep.subr.mxu0 0.0
        %854 = vmatpush1.msra.mxu0 0.0
        %855 = vmatprep.subr.mxu0 0.0
        %856 = vmatpush1.msra.mxu0 0.0
        %857 = vmatprep.subr.mxu0 0.0
        %858 = vmatpush1.msra.mxu0 0.0
        %859 = vmatprep.subr.mxu0 0.0
        %860 = vmatpush1.msra.mxu0 0.0
        %861 = vmatprep.mubr.f32.mxu0 0.0
        %862 = vmatmul.mubr.f32.gmra.mrb[0].mxu0 %v774
        %v863 = vpop.f32.mrb[0].mxu0
        %v864 = vadd.f32 0.0, %v863
        %v865 = vpop.f32.mrb[0].mxu0
        %866 = vmatprep.mubr.f32.mxu0 0.0
        %867 = vmatmul.mubr.f32.gmra.mrb[0].mxu0 %v777
        %v868 = vpop.f32.mrb[0].mxu0
        %v869 = vadd.f32 0.0, %v868
        %v870 = vpop.f32.mrb[0].mxu0
        %871 = vmatprep.mubr.f32.mxu0 0.0
        %872 = vmatmul.mubr.f32.gmra.mrb[0].mxu0 %v780
        %v873 = vpop.f32.mrb[0].mxu0
        %v874 = vadd.f32 0.0, %v873
        %v875 = vpop.f32.mrb[0].mxu0
        %876 = vmatprep.mubr.f32.mxu0 0.0
        %877 = vmatmul.mubr.f32.gmra.mrb[0].mxu0 %v783
        %v878 = vpop.f32.mrb[0].mxu0
        %v879 = vadd.f32 0.0, %v878
        %v880 = vpop.f32.mrb[0].mxu0
        %881 = vmatprep.mubr.f32.mxu0 0.0
        %882 = vmatmul.mubr.f32.gmra.mrb[0].mxu0 %v786
        %v883 = vpop.f32.mrb[0].mxu0
        %v884 = vadd.f32 0.0, %v883
        %v885 = vpop.f32.mrb[0].mxu0
        %886 = vmatprep.mubr.f32.mxu0 0.0
        %887 = vmatmul.mubr.f32.gmra.mrb[0].mxu0 %v789
        %v888 = vpop.f32.mrb[0].mxu0
        %v889 = vadd.f32 0.0, %v888
        %v890 = vpop.f32.mrb[0].mxu0
        %891 = vmatprep.mubr.f32.mxu0 0.0
        %892 = vmatmul.mubr.f32.gmra.mrb[0].mxu0 %v792
        %v893 = vpop.f32.mrb[0].mxu0
        %v894 = vadd.f32 0.0, %v893
        %v895 = vpop.f32.mrb[0].mxu0
        %896 = vmatprep.mubr.f32.mxu0 0.0
        %897 = vmatmul.mubr.f32.gmra.mrb[0].mxu0 %v795
        %v898 = vpop.f32.mrb[0].mxu0
        %v899 = vadd.f32 0.0, %v898
        %v900 = vpop.f32.mrb[0].mxu0
        %901 = vdwg.mxu0
        %v902 = vadd.f32 %v714, %v864
        %v903 = vadd.f32 %v719, %v869
        %v904 = vadd.f32 %v724, %v874
        %v905 = vadd.f32 %v729, %v879
        %v906 = vadd.f32 %v734, %v884
        %v907 = vadd.f32 %v739, %v889
        %v908 = vadd.f32 %v744, %v894
        %v909 = vadd.f32 %v749, %v899
        %s910 = scalar_lea.vmem %s4, 192
        %v911 = vld [vmem:[%s910] sm:$0xff]
        %v912 = vld [vmem:[%s910 + $0x8] sm:$0xff]
        %v913 = vld [vmem:[%s910 + $0x10] sm:$0xff]
        %v914 = vld [vmem:[%s910 + $0x18] sm:$0xff]
        %v915 = vld [vmem:[%s910 + $0x20] sm:$0xff]
        %v916 = vld [vmem:[%s910 + $0x28] sm:$0xff]
        %v917 = vld [vmem:[%s910 + $0x30] sm:$0xff]
        %v918 = vld [vmem:[%s910 + $0x38] sm:$0xff]
        %v919 = vlaneseq
        %v920 = vshrl.u32 %v919, 7
        %v921 = vsub.s32 3, %v920
        %v922 = vrot.slane %v451, %v921
        %v923 = vmul.f32 %v413, %v922
        %v924 = vmul.f32 %v418, %v922
        %v925 = vmul.f32 %v423, %v922
        %v926 = vmul.f32 %v428, %v922
        %v927 = vmul.f32 %v433, %v922
        %v928 = vmul.f32 %v438, %v922
        %v929 = vmul.f32 %v443, %v922
        %v930 = vmul.f32 %v448, %v922
        %v932 = vsel %vm493, %v911, 0
        %v935 = vsel %vm493, %v912, 0
        %v938 = vsel %vm493, %v913, 0
        %v941 = vsel %vm493, %v914, 0
        %v944 = vsel %vm493, %v915, 0
        %v947 = vsel %vm493, %v916, 0
        %v950 = vsel %vm493, %v917, 0
        %v953 = vsel %vm493, %v918, 0
        %955 = vmatprep.subr.mxu0 0.0
        %956 = vmatpush1.msra.mxu0 %v923
        %957 = vmatprep.subr.mxu0 0.0
        %958 = vmatpush1.msra.mxu0 %v924
        %959 = vmatprep.subr.mxu0 0.0
        %960 = vmatpush1.msra.mxu0 %v925
        %961 = vmatprep.subr.mxu0 0.0
        %962 = vmatpush1.msra.mxu0 %v926
        %963 = vmatprep.subr.mxu0 0.0
        %964 = vmatpush1.msra.mxu0 %v927
        %965 = vmatprep.subr.mxu0 0.0
        %966 = vmatpush1.msra.mxu0 %v928
        %967 = vmatprep.subr.mxu0 0.0
        %968 = vmatpush1.msra.mxu0 %v929
        %969 = vmatprep.subr.mxu0 0.0
        %970 = vmatpush1.msra.mxu0 %v930
        %971 = vmatprep.subr.mxu0 0.0
        %972 = vmatpush1.msra.mxu0 0.0
        %973 = vmatprep.subr.mxu0 0.0
        %974 = vmatpush1.msra.mxu0 0.0
        %975 = vmatprep.subr.mxu0 0.0
        %976 = vmatpush1.msra.mxu0 0.0
        %977 = vmatprep.subr.mxu0 0.0
        %978 = vmatpush1.msra.mxu0 0.0
        %979 = vmatprep.subr.mxu0 0.0
        %980 = vmatpush1.msra.mxu0 0.0
        %981 = vmatprep.subr.mxu0 0.0
        %982 = vmatpush1.msra.mxu0 0.0
        %983 = vmatprep.subr.mxu0 0.0
        %984 = vmatpush1.msra.mxu0 0.0
        %985 = vmatprep.subr.mxu0 0.0
        %986 = vmatpush1.msra.mxu0 0.0
        %987 = vmatprep.subr.mxu0 0.0
        %988 = vmatpush1.msra.mxu0 0.0
        %989 = vmatprep.subr.mxu0 0.0
        %990 = vmatpush1.msra.mxu0 0.0
        %991 = vmatprep.subr.mxu0 0.0
        %992 = vmatpush1.msra.mxu0 0.0
        %993 = vmatprep.subr.mxu0 0.0
        %994 = vmatpush1.msra.mxu0 0.0
        %995 = vmatprep.subr.mxu0 0.0
        %996 = vmatpush1.msra.mxu0 0.0
        %997 = vmatprep.subr.mxu0 0.0
        %998 = vmatpush1.msra.mxu0 0.0
        %999 = vmatprep.subr.mxu0 0.0
        %1000 = vmatpush1.msra.mxu0 0.0
        %1001 = vmatprep.subr.mxu0 0.0
        %1002 = vmatpush1.msra.mxu0 0.0
        %1003 = vmatprep.subr.mxu0 0.0
        %1004 = vmatpush1.msra.mxu0 0.0
        %1005 = vmatprep.subr.mxu0 0.0
        %1006 = vmatpush1.msra.mxu0 0.0
        %1007 = vmatprep.subr.mxu0 0.0
        %1008 = vmatpush1.msra.mxu0 0.0
        %1009 = vmatprep.subr.mxu0 0.0
        %1010 = vmatpush1.msra.mxu0 0.0
        %1011 = vmatprep.subr.mxu0 0.0
        %1012 = vmatpush1.msra.mxu0 0.0
        %1013 = vmatprep.subr.mxu0 0.0
        %1014 = vmatpush1.msra.mxu0 0.0
        %1015 = vmatprep.subr.mxu0 0.0
        %1016 = vmatpush1.msra.mxu0 0.0
        %1017 = vmatprep.subr.mxu0 0.0
        %1018 = vmatpush1.msra.mxu0 0.0
        %1019 = vmatprep.mubr.f32.mxu0 0.0
        %1020 = vmatmul.mubr.f32.gmra.mrb[0].mxu0 %v932
        %v1021 = vpop.f32.mrb[0].mxu0
        %v1022 = vadd.f32 0.0, %v1021
        %v1023 = vpop.f32.mrb[0].mxu0
        %1024 = vmatprep.mubr.f32.mxu0 0.0
        %1025 = vmatmul.mubr.f32.gmra.mrb[0].mxu0 %v935
        %v1026 = vpop.f32.mrb[0].mxu0
        %v1027 = vadd.f32 0.0, %v1026
        %v1028 = vpop.f32.mrb[0].mxu0
        %1029 = vmatprep.mubr.f32.mxu0 0.0
        %1030 = vmatmul.mubr.f32.gmra.mrb[0].mxu0 %v938
        %v1031 = vpop.f32.mrb[0].mxu0
        %v1032 = vadd.f32 0.0, %v1031
        %v1033 = vpop.f32.mrb[0].mxu0
        %1034 = vmatprep.mubr.f32.mxu0 0.0
        %1035 = vmatmul.mubr.f32.gmra.mrb[0].mxu0 %v941
        %v1036 = vpop.f32.mrb[0].mxu0
        %v1037 = vadd.f32 0.0, %v1036
        %v1038 = vpop.f32.mrb[0].mxu0
        %1039 = vmatprep.mubr.f32.mxu0 0.0
        %1040 = vmatmul.mubr.f32.gmra.mrb[0].mxu0 %v944
        %v1041 = vpop.f32.mrb[0].mxu0
        %v1042 = vadd.f32 0.0, %v1041
        %v1043 = vpop.f32.mrb[0].mxu0
        %1044 = vmatprep.mubr.f32.mxu0 0.0
        %1045 = vmatmul.mubr.f32.gmra.mrb[0].mxu0 %v947
        %v1046 = vpop.f32.mrb[0].mxu0
        %v1047 = vadd.f32 0.0, %v1046
        %v1048 = vpop.f32.mrb[0].mxu0
        %1049 = vmatprep.mubr.f32.mxu0 0.0
        %1050 = vmatmul.mubr.f32.gmra.mrb[0].mxu0 %v950
        %v1051 = vpop.f32.mrb[0].mxu0
        %v1052 = vadd.f32 0.0, %v1051
        %v1053 = vpop.f32.mrb[0].mxu0
        %1054 = vmatprep.mubr.f32.mxu0 0.0
        %1055 = vmatmul.mubr.f32.gmra.mrb[0].mxu0 %v953
        %v1056 = vpop.f32.mrb[0].mxu0
        %v1057 = vadd.f32 0.0, %v1056
        %v1058 = vpop.f32.mrb[0].mxu0
        %1059 = vdwg.mxu0
        %v1060 = vadd.f32 %v902, %v1022
        %v1061 = vadd.f32 %v903, %v1027
        %v1062 = vadd.f32 %v904, %v1032
        %v1063 = vadd.f32 %v905, %v1037
        %v1064 = vadd.f32 %v906, %v1042
        %v1065 = vadd.f32 %v907, %v1047
        %v1066 = vadd.f32 %v908, %v1052
        %v1067 = vadd.f32 %v909, %v1057
        %v1068 = vld [vmem:[#allocation2] sm:$0xff]
        %v1069 = vld [vmem:[#allocation2 + $0x8] sm:$0xff]
        %v1070 = vld [vmem:[#allocation2 + $0x10] sm:$0xff]
        %v1071 = vld [vmem:[#allocation2 + $0x18] sm:$0xff]
        %v1072 = vld [vmem:[#allocation2 + $0x20] sm:$0xff]
        %v1073 = vld [vmem:[#allocation2 + $0x28] sm:$0xff]
        %v1074 = vld [vmem:[#allocation2 + $0x30] sm:$0xff]
        %v1075 = vld [vmem:[#allocation2 + $0x38] sm:$0xff]
        %v1076 = vld [vmem:[#allocation2 + $0x40] sm:$0xff]
        %v1077 = vld [vmem:[#allocation2 + $0x48] sm:$0xff]
        %v1078 = vld [vmem:[#allocation2 + $0x50] sm:$0xff]
        %v1079 = vld [vmem:[#allocation2 + $0x58] sm:$0xff]
        %v1080 = vld [vmem:[#allocation2 + $0x60] sm:$0xff]
        %v1081 = vld [vmem:[#allocation2 + $0x68] sm:$0xff]
        %v1082 = vld [vmem:[#allocation2 + $0x70] sm:$0xff]
        %v1083 = vld [vmem:[#allocation2 + $0x78] sm:$0xff]
        %v1085 = vsel %vm493, %v1060, 0
        %v1088 = vsel %vm493, %v1061, 0
        %v1091 = vsel %vm493, %v1062, 0
        %v1094 = vsel %vm493, %v1063, 0
        %v1097 = vsel %vm493, %v1064, 0
        %v1100 = vsel %vm493, %v1065, 0
        %v1103 = vsel %vm493, %v1066, 0
        %v1106 = vsel %vm493, %v1067, 0
        %1108 = vmatprep.subr.mxu0 %v1069
        %1109 = vmatpush1.msra.mxu0 %v1068
        %1110 = vmatprep.subr.mxu0 %v1071
        %1111 = vmatpush1.msra.mxu0 %v1070
        %1112 = vmatprep.subr.mxu0 %v1073
        %1113 = vmatpush1.msra.mxu0 %v1072
        %1114 = vmatprep.subr.mxu0 %v1075
        %1115 = vmatpush1.msra.mxu0 %v1074
        %1116 = vmatprep.subr.mxu0 %v1077
        %1117 = vmatpush1.msra.mxu0 %v1076
        %1118 = vmatprep.subr.mxu0 %v1079
        %1119 = vmatpush1.msra.mxu0 %v1078
        %1120 = vmatprep.subr.mxu0 %v1081
        %1121 = vmatpush1.msra.mxu0 %v1080
        %1122 = vmatprep.subr.mxu0 %v1083
        %1123 = vmatpush1.msra.mxu0 %v1082
        %1124 = vmatprep.subr.mxu0 0.0
        %1125 = vmatpush1.msra.mxu0 0.0
        %1126 = vmatprep.subr.mxu0 0.0
        %1127 = vmatpush1.msra.mxu0 0.0
        %1128 = vmatprep.subr.mxu0 0.0
        %1129 = vmatpush1.msra.mxu0 0.0
        %1130 = vmatprep.subr.mxu0 0.0
        %1131 = vmatpush1.msra.mxu0 0.0
        %1132 = vmatprep.subr.mxu0 0.0
        %1133 = vmatpush1.msra.mxu0 0.0
        %1134 = vmatprep.subr.mxu0 0.0
        %1135 = vmatpush1.msra.mxu0 0.0
        %1136 = vmatprep.subr.mxu0 0.0
        %1137 = vmatpush1.msra.mxu0 0.0
        %1138 = vmatprep.subr.mxu0 0.0
        %1139 = vmatpush1.msra.mxu0 0.0
        %1140 = vmatprep.subr.mxu0 0.0
        %1141 = vmatpush1.msra.mxu0 0.0
        %1142 = vmatprep.subr.mxu0 0.0
        %1143 = vmatpush1.msra.mxu0 0.0
        %1144 = vmatprep.subr.mxu0 0.0
        %1145 = vmatpush1.msra.mxu0 0.0
        %1146 = vmatprep.subr.mxu0 0.0
        %1147 = vmatpush1.msra.mxu0 0.0
        %1148 = vmatprep.subr.mxu0 0.0
        %1149 = vmatpush1.msra.mxu0 0.0
        %1150 = vmatprep.subr.mxu0 0.0
        %1151 = vmatpush1.msra.mxu0 0.0
        %1152 = vmatprep.subr.mxu0 0.0
        %1153 = vmatpush1.msra.mxu0 0.0
        %1154 = vmatprep.subr.mxu0 0.0
        %1155 = vmatpush1.msra.mxu0 0.0
        %1156 = vmatprep.subr.mxu0 0.0
        %1157 = vmatpush1.msra.mxu0 0.0
        %1158 = vmatprep.subr.mxu0 0.0
        %1159 = vmatpush1.msra.mxu0 0.0
        %1160 = vmatprep.subr.mxu0 0.0
        %1161 = vmatpush1.msra.mxu0 0.0
        %1162 = vmatprep.subr.mxu0 0.0
        %1163 = vmatpush1.msra.mxu0 0.0
        %1164 = vmatprep.subr.mxu0 0.0
        %1165 = vmatpush1.msra.mxu0 0.0
        %1166 = vmatprep.subr.mxu0 0.0
        %1167 = vmatpush1.msra.mxu0 0.0
        %1168 = vmatprep.subr.mxu0 0.0
        %1169 = vmatpush1.msra.mxu0 0.0
        %1170 = vmatprep.subr.mxu0 0.0
        %1171 = vmatpush1.msra.mxu0 0.0
        %1172 = vmatprep.mubr.f32.mxu0 0.0
        %1173 = vmatmul.mubr.f32.gmra.mrb[0].mxu0 %v1085
        %v1174 = vpop.f32.mrb[0].mxu0
        %v1175 = vadd.f32 0.0, %v1174
        %v1176 = vpop.f32.mrb[0].mxu0
        %v1177 = vadd.f32 0.0, %v1176
        %1178 = vmatprep.mubr.f32.mxu0 0.0
        %1179 = vmatmul.mubr.f32.gmra.mrb[0].mxu0 %v1088
        %v1180 = vpop.f32.mrb[0].mxu0
        %v1181 = vadd.f32 0.0, %v1180
        %v1182 = vpop.f32.mrb[0].mxu0
        %v1183 = vadd.f32 0.0, %v1182
        %1184 = vmatprep.mubr.f32.mxu0 0.0
        %1185 = vmatmul.mubr.f32.gmra.mrb[0].mxu0 %v1091
        %v1186 = vpop.f32.mrb[0].mxu0
        %v1187 = vadd.f32 0.0, %v1186
        %v1188 = vpop.f32.mrb[0].mxu0
        %v1189 = vadd.f32 0.0, %v1188
        %1190 = vmatprep.mubr.f32.mxu0 0.0
        %1191 = vmatmul.mubr.f32.gmra.mrb[0].mxu0 %v1094
        %v1192 = vpop.f32.mrb[0].mxu0
        %v1193 = vadd.f32 0.0, %v1192
        %v1194 = vpop.f32.mrb[0].mxu0
        %v1195 = vadd.f32 0.0, %v1194
        %1196 = vmatprep.mubr.f32.mxu0 0.0
        %1197 = vmatmul.mubr.f32.gmra.mrb[0].mxu0 %v1097
        %v1198 = vpop.f32.mrb[0].mxu0
        %v1199 = vadd.f32 0.0, %v1198
        %v1200 = vpop.f32.mrb[0].mxu0
        %v1201 = vadd.f32 0.0, %v1200
        %1202 = vmatprep.mubr.f32.mxu0 0.0
        %1203 = vmatmul.mubr.f32.gmra.mrb[0].mxu0 %v1100
        %v1204 = vpop.f32.mrb[0].mxu0
        %v1205 = vadd.f32 0.0, %v1204
        %v1206 = vpop.f32.mrb[0].mxu0
        %v1207 = vadd.f32 0.0, %v1206
        %1208 = vmatprep.mubr.f32.mxu0 0.0
        %1209 = vmatmul.mubr.f32.gmra.mrb[0].mxu0 %v1103
        %v1210 = vpop.f32.mrb[0].mxu0
        %v1211 = vadd.f32 0.0, %v1210
        %v1212 = vpop.f32.mrb[0].mxu0
        %v1213 = vadd.f32 0.0, %v1212
        %1214 = vmatprep.mubr.f32.mxu0 0.0
        %1215 = vmatmul.mubr.f32.gmra.mrb[0].mxu0 %v1106
        %v1216 = vpop.f32.mrb[0].mxu0
        %v1217 = vadd.f32 0.0, %v1216
        %v1218 = vpop.f32.mrb[0].mxu0
        %v1219 = vadd.f32 0.0, %v1218
        %1220 = vdwg.mxu0
        %v1221 = vadd.f32 %v1175, %v1177
        %1222 = vadd.xlane.f32.xlu0 %v1221
        %v1223 = vpop.xlane.xlu0 %1222
        %v1224 = vadd.f32 %v1181, %v1183
        %1225 = vadd.xlane.f32.xlu0 %v1224
        %v1226 = vpop.xlane.xlu0 %1225
        %v1227 = vadd.f32 %v1187, %v1189
        %1228 = vadd.xlane.f32.xlu0 %v1227
        %v1229 = vpop.xlane.xlu0 %1228
        %v1230 = vadd.f32 %v1193, %v1195
        %1231 = vadd.xlane.f32.xlu0 %v1230
        %v1232 = vpop.xlane.xlu0 %1231
        %v1233 = vadd.f32 %v1199, %v1201
        %1234 = vadd.xlane.f32.xlu0 %v1233
        %v1235 = vpop.xlane.xlu0 %1234
        %v1236 = vadd.f32 %v1205, %v1207
        %1237 = vadd.xlane.f32.xlu0 %v1236
        %v1238 = vpop.xlane.xlu0 %1237
        %v1239 = vadd.f32 %v1211, %v1213
        %1240 = vadd.xlane.f32.xlu0 %v1239
        %v1241 = vpop.xlane.xlu0 %1240
        %v1242 = vadd.f32 %v1217, %v1219
        %1243 = vadd.xlane.f32.xlu0 %v1242
        %v1244 = vpop.xlane.xlu0 %1243
        %v1245 = vmul.f32 %v1223, 0.00390625
        %v1246 = vmul.f32 %v1226, 0.00390625
        %v1247 = vmul.f32 %v1229, 0.00390625
        %v1248 = vmul.f32 %v1232, 0.00390625
        %v1249 = vmul.f32 %v1235, 0.00390625
        %v1250 = vmul.f32 %v1238, 0.00390625
        %v1251 = vmul.f32 %v1241, 0.00390625
        %v1252 = vmul.f32 %v1244, 0.00390625
        %v1253 = vld [vmem:[%s5] sm:$0xff]
        %v1254 = vld [vmem:[%s5 + $0x8] sm:$0xff]
        %v1255 = vld [vmem:[%s5 + $0x10] sm:$0xff]
        %v1256 = vld [vmem:[%s5 + $0x18] sm:$0xff]
        %v1257 = vld [vmem:[%s5 + $0x20] sm:$0xff]
        %v1258 = vld [vmem:[%s5 + $0x28] sm:$0xff]
        %v1259 = vld [vmem:[%s5 + $0x30] sm:$0xff]
        %v1260 = vld [vmem:[%s5 + $0x38] sm:$0xff]
        %v1261 = vmul.f32 %v1253, %v1245
        %v1262 = vmul.f32 %v1254, %v1246
        %v1263 = vmul.f32 %v1255, %v1247
        %v1264 = vmul.f32 %v1256, %v1248
        %v1265 = vmul.f32 %v1257, %v1249
        %v1266 = vmul.f32 %v1258, %v1250
        %v1267 = vmul.f32 %v1259, %v1251
        %v1268 = vmul.f32 %v1260, %v1252
        %vm1269 = vcmask 31744
        %v1270 = vsel %vm1269, %v1261, 0.0
        %v1271 = vsel %vm1269, %v1262, 0.0
        %v1272 = vadd.f32 %v1270, %v1271
        %v1273 = vsel %vm1269, %v1263, 0.0
        %v1274 = vadd.f32 %v1272, %v1273
        %v1275 = vsel %vm1269, %v1264, 0.0
        %v1276 = vadd.f32 %v1274, %v1275
        %v1277 = vsel %vm1269, %v1265, 0.0
        %v1278 = vadd.f32 %v1276, %v1277
        %v1279 = vsel %vm1269, %v1266, 0.0
        %v1280 = vadd.f32 %v1278, %v1279
        %v1281 = vsel %vm1269, %v1267, 0.0
        %v1282 = vadd.f32 %v1280, %v1281
        %v1283 = vsel %vm1269, %v1268, 0.0
        %v1284 = vadd.f32 %v1282, %v1283
        %v1285 = vrot.slane %v1284, 4
        %v1286 = vadd.f32 %v1284, %v1285
        %v1287 = vrot.slane %v1286, 2
        %v1288 = vadd.f32 %v1286, %v1287
        %v1289 = vrot.slane %v1288, 1
        %v1290 = vadd.f32 %v1288, %v1289
        %v1291 = vmax.f32 %v1290, 0.0
        %v1292 = vld [vmem:[%s6] sm:$0xff]
        %v1293 = vld [vmem:[%s6 + $0x8] sm:$0xff]
        %v1294 = vld [vmem:[%s6 + $0x10] sm:$0xff]
        %v1295 = vld [vmem:[%s6 + $0x18] sm:$0xff]
        %v1296 = vld [vmem:[%s6 + $0x20] sm:$0xff]
        %v1297 = vld [vmem:[%s6 + $0x28] sm:$0xff]
        %v1298 = vld [vmem:[%s6 + $0x30] sm:$0xff]
        %v1299 = vld [vmem:[%s6 + $0x38] sm:$0xff]
        %v1300 = vmul.f32 %v1292, %v1291
        %v1301 = vmul.f32 %v1293, %v1291
        %v1302 = vmul.f32 %v1294, %v1291
        %v1303 = vmul.f32 %v1295, %v1291
        %v1304 = vmul.f32 %v1296, %v1291
        %v1305 = vmul.f32 %v1297, %v1291
        %v1306 = vmul.f32 %v1298, %v1291
        %v1307 = vmul.f32 %v1299, %v1291
        %v1308 = vsel %vm1269, %v1300, 0.0
        %1309 = vadd.xlane.f32.xlu0 %v1308
        %v1310 = vpop.xlane.xlu0 %1309
        %v1311 = vsel %vm1269, %v1301, 0.0
        %1312 = vadd.xlane.f32.xlu0 %v1311
        %v1313 = vpop.xlane.xlu0 %1312
        %v1314 = vsel %vm1269, %v1302, 0.0
        %1315 = vadd.xlane.f32.xlu0 %v1314
        %v1316 = vpop.xlane.xlu0 %1315
        %v1317 = vsel %vm1269, %v1303, 0.0
        %1318 = vadd.xlane.f32.xlu0 %v1317
        %v1319 = vpop.xlane.xlu0 %1318
        %v1320 = vsel %vm1269, %v1304, 0.0
        %1321 = vadd.xlane.f32.xlu0 %v1320
        %v1322 = vpop.xlane.xlu0 %1321
        %v1323 = vsel %vm1269, %v1305, 0.0
        %1324 = vadd.xlane.f32.xlu0 %v1323
        %v1325 = vpop.xlane.xlu0 %1324
        %v1326 = vsel %vm1269, %v1306, 0.0
        %1327 = vadd.xlane.f32.xlu0 %v1326
        %v1328 = vpop.xlane.xlu0 %1327
        %v1329 = vsel %vm1269, %v1307, 0.0
        %1330 = vadd.xlane.f32.xlu0 %v1329
        %v1331 = vpop.xlane.xlu0 %1330
        %v1332 = vxor.u32 %v1310, 2147483648
        %v1333 = vxor.u32 %v1313, 2147483648
        %v1334 = vxor.u32 %v1316, 2147483648
        %v1335 = vxor.u32 %v1319, 2147483648
        %v1336 = vxor.u32 %v1322, 2147483648
        %v1337 = vxor.u32 %v1325, 2147483648
        %v1338 = vxor.u32 %v1328, 2147483648
        %v1339 = vxor.u32 %v1331, 2147483648
        %v1340 = vmul.f32 %v1332, 1.442695
        %v1341 = vpow.pop %v1340
        %v1342 = vmul.f32 %v1333, 1.442695
        %v1343 = vpow.pop %v1342
        %v1344 = vmul.f32 %v1334, 1.442695
        %v1345 = vpow.pop %v1344
        %v1346 = vmul.f32 %v1335, 1.442695
        %v1347 = vpow.pop %v1346
        %v1348 = vmul.f32 %v1336, 1.442695
        %v1349 = vpow.pop %v1348
        %v1350 = vmul.f32 %v1337, 1.442695
        %v1351 = vpow.pop %v1350
        %v1352 = vmul.f32 %v1338, 1.442695
        %v1353 = vpow.pop %v1352
        %v1354 = vmul.f32 %v1339, 1.442695
        %v1355 = vpow.pop %v1354
        %v1356 = vadd.f32 %v1341, 1.0
        %v1357 = vadd.f32 %v1343, 1.0
        %v1358 = vadd.f32 %v1345, 1.0
        %v1359 = vadd.f32 %v1347, 1.0
        %v1360 = vadd.f32 %v1349, 1.0
        %v1361 = vadd.f32 %v1351, 1.0
        %v1362 = vadd.f32 %v1353, 1.0
        %v1363 = vadd.f32 %v1355, 1.0
        %v1364 = vrcp.pop %v1356
        %v1365 = vmul.f32 1.0, %v1364
        %v1366 = vrcp.pop %v1357
        %v1367 = vmul.f32 1.0, %v1366
        %v1368 = vrcp.pop %v1358
        %v1369 = vmul.f32 1.0, %v1368
        %v1370 = vrcp.pop %v1359
        %v1371 = vmul.f32 1.0, %v1370
        %v1372 = vrcp.pop %v1360
        %v1373 = vmul.f32 1.0, %v1372
        %v1374 = vrcp.pop %v1361
        %v1375 = vmul.f32 1.0, %v1374
        %v1376 = vrcp.pop %v1362
        %v1377 = vmul.f32 1.0, %v1376
        %v1378 = vrcp.pop %v1363
        %v1379 = vmul.f32 1.0, %v1378
        %v1380 = vmul.f32 %v1175, %v1365
        %v1381 = vmul.f32 %v1177, %v1365
        %v1382 = vmul.f32 %v1181, %v1367
        %v1383 = vmul.f32 %v1183, %v1367
        %v1384 = vmul.f32 %v1187, %v1369
        %v1385 = vmul.f32 %v1189, %v1369
        %v1386 = vmul.f32 %v1193, %v1371
        %v1387 = vmul.f32 %v1195, %v1371
        %v1388 = vmul.f32 %v1199, %v1373
        %v1389 = vmul.f32 %v1201, %v1373
        %v1390 = vmul.f32 %v1205, %v1375
        %v1391 = vmul.f32 %v1207, %v1375
        %v1392 = vmul.f32 %v1211, %v1377
        %v1393 = vmul.f32 %v1213, %v1377
        %v1394 = vmul.f32 %v1217, %v1379
        %v1395 = vmul.f32 %v1219, %v1379
        %1396 = vst [vmem:[%s289] sm:$0xff] %v1380
        %1397 = vst [vmem:[%s289 + $0x8] sm:$0xff] %v1381
        %1398 = vst [vmem:[%s289 + $0x10] sm:$0xff] %v1382
        %1399 = vst [vmem:[%s289 + $0x18] sm:$0xff] %v1383
        %1400 = vst [vmem:[%s289 + $0x20] sm:$0xff] %v1384
        %1401 = vst [vmem:[%s289 + $0x28] sm:$0xff] %v1385
        %1402 = vst [vmem:[%s289 + $0x30] sm:$0xff] %v1386
        %1403 = vst [vmem:[%s289 + $0x38] sm:$0xff] %v1387
        %1404 = vst [vmem:[%s289 + $0x40] sm:$0xff] %v1388
        %1405 = vst [vmem:[%s289 + $0x48] sm:$0xff] %v1389
        %1406 = vst [vmem:[%s289 + $0x50] sm:$0xff] %v1390
        %1407 = vst [vmem:[%s289 + $0x58] sm:$0xff] %v1391
        %1408 = vst [vmem:[%s289 + $0x60] sm:$0xff] %v1392
        %1409 = vst [vmem:[%s289 + $0x68] sm:$0xff] %v1393
        %1410 = vst [vmem:[%s289 + $0x70] sm:$0xff] %v1394
        %1411 = vst [vmem:[%s289 + $0x78] sm:$0xff] %v1395
        %s1412 = sand.u32 %s182, 1
        %s1413 = scalar_lea.sflag [#allocation4], %s1412
        %s1414 = sand.u32 %s182, 1
        %s1415 = smul.addr %s1414, 128
        %s1416 = scalar_lea.vmem [#allocation5], %s1415
        // Predicated region
        $region53: #{tpu_custom_call.1} parent=47 // pred_check
          %p1417 = pneg %p192
        $region54: #{tpu_custom_call.1} parent=47 // pred_check_branch
          %1419 = sbr.rel (%p1417) target = $region56
        $region55: #{tpu_custom_call.1} parent=47 // pred_region
          %s1420 = smul.u32 8, %s22
          %s1422 = ssub.s32 2048, 2048
          %1423 = vsyncadd %s1413, %s1422
          %s1424 = smul.addr %s1420, 2
          %s1425 = smul.addr %s1424, 128
          %s1426 = scalar_lea.hbm %s7, %s1425
          %s1427 = sshll.u32 %s1416, 4
          %s1428 = int_to_ptr.vmem [resolvable:$true] %s1427
          %1433 = dma.vmem_to_hbm [thread:$0]  %s1428, 2048, %s1426, %s1413, 256, 256, 16
        $region56: #{tpu_custom_call.1} parent=47 // pred_fallthru
          _
      $region48: #{tpu_custom_call.1} parent=5 // pred_fallthru
        _
      %p1434 = scmp.le.s32.totalorder 2, %s17
      // Predicated region
      $region57: #{tpu_custom_call.1} parent=5 // pred_check
        %p1435 = pneg %p1434
      $region58: #{tpu_custom_call.1} parent=5 // pred_check_branch
        %1437 = sbr.rel (%p1435) target = $region60
      $region59: #{tpu_custom_call.1} parent=5 // pred_region
        %s1438 = ssub.s32 %s17, 2
        // Predicated region
        $region61: #{tpu_custom_call.1} parent=59 // pred_check
          %p1439 = pneg %p198
        $region62: #{tpu_custom_call.1} parent=59 // pred_check_branch
          %1441 = sbr.rel (%p1439) target = $region64
        $region63: #{tpu_custom_call.1} parent=59 // pred_region
          %s1442 = sand.u32 %s183, 1
          %s1443 = scalar_lea.sflag [#allocation4], %s1442
          %s1444 = sand.u32 %s183, 1
          %s1445 = smul.addr %s1444, 128
          %s1446 = scalar_lea.vmem [#allocation5], %s1445
          %1447 = dma.done %s1443, 2048
        $region64: #{tpu_custom_call.1} parent=59 // pred_fallthru
          _
      $region60: #{tpu_custom_call.1} parent=5 // pred_fallthru
        _
    $region6: #{tpu_custom_call.1} parent=1 // loop_footer
      %s21 = sadd.s32 1, %s17
    $region7: #{tpu_custom_call.1} parent=1 // loop_footer_branch
      %16 = sbr.rel target = $region3
    $region8: #{tpu_custom_call.1} parent=1 // loop_exit
      _
    %1448 = vsyncpa [#allocation3], 1
    %s1449 = scalar_lea.sflag [#allocation3], 1
    %1450 = vsyncpa %s1449, 1
    %1451 = vsyncpa [#allocation4], 1
    %s1452 = scalar_lea.sflag [#allocation4], 1
    %1453 = vsyncpa %s1452, 1

</llo_original>
